<compile_context>
chip_gen: v7x
topology: tpu7x:2x2x1
jax: 0.10.0
libtpu: 0.0.40
codegen_flags: <defaults>
</compile_context>

<pallas_src>
import functools

import jax
import jax.numpy as jnp
from jax.experimental import pallas as pl
from jax.experimental.pallas import tpu as pltpu

_LANE = 128
_SUBLANE = 8


def _fitter_kernel(x_ref, w1s_ref, w1c_ref, b1_ref, w2_ref, b2_ref, y_ref,
                   *, hidden, activation):
    # x_ref / y_ref: (TILE_ROWS, 128) lane-dense samples; params are 1-D SMEM arrays.
    x = x_ref[...]                       # (TILE_ROWS, 128) f32
    s = jnp.sin(x)                       # EUP, fully dense vregs
    c = jnp.cos(x)                       # EUP
    acc = jnp.zeros_like(x)              # fc2 accumulator (samples stay lane-dense)
    # fc1 + activation + fc2 reduction, fully unrolled over the H hidden units.
    # Each iteration: 2 scalar-broadcast FMAs + 1 FMA (VPU) and 1 tanh (EUP).
    for j in range(hidden):
        hj = activation(s * w1s_ref[j] + c * w1c_ref[j] + b1_ref[j])
        acc = acc + hj * w2_ref[j]
    y_ref[...] = (acc + b2_ref[0]).astype(y_ref.dtype)


def fitter_forward(x, w1, b1, w2, b2, activation=jnp.tanh, tile_rows=64):
    """Forward pass of Fitter.

    x:  (N, 1) float32 sample points
    w1: (2, H)  fc1 weight, (in, out) layout   (== torch fc1.weight.T)
    b1: (H,)    fc1 bias
    w2: (H, 1)  fc2 weight, (in, out) layout   (== torch fc2.weight.T)
    b2: (1,)    fc2 bias
    returns y: (N, 1)
    """
    N = x.shape[0]
    H = b1.shape[0]

    # Shrink the tile for small N (keep sublane-multiple rows) so padding stays bounded.
    rows_needed = pl.cdiv(N, _LANE)
    tile_rows = max(_SUBLANE, min(tile_rows,
                                  ((rows_needed + _SUBLANE - 1) // _SUBLANE) * _SUBLANE))
    tile = tile_rows * _LANE

    # Pad N up to a multiple of the tile and lay samples out lane-dense.
    n_pad = pl.cdiv(N, tile) * tile
    xf = x.reshape(-1)
    if n_pad != N:
        xf = jnp.pad(xf, (0, n_pad - N))
    rows = n_pad // _LANE
    x2d = xf.reshape(rows, _LANE)

    kernel = functools.partial(_fitter_kernel, hidden=H, activation=activation)
    smem_spec = pl.BlockSpec(memory_space=pltpu.MemorySpace.SMEM)

    cost = pl.CostEstimate(
        flops=int(n_pad) * (4 * H + 3),
        transcendentals=int(n_pad) * (H + 2),
        bytes_accessed=int(n_pad) * 8 + (4 * H + 1) * 4,
    )

    y2d = pl.pallas_call(
        kernel,
        out_shape=jax.ShapeDtypeStruct((rows, _LANE), x.dtype),
        grid=(rows // tile_rows,),
        in_specs=[
            pl.BlockSpec((tile_rows, _LANE), lambda i: (i, 0)),  # x tile (lane-dense)
            smem_spec,   # w1 row for sin  (H,)
            smem_spec,   # w1 row for cos  (H,)
            smem_spec,   # b1              (H,)
            smem_spec,   # w2              (H,)
            smem_spec,   # b2              (1,)
        ],
        out_specs=pl.BlockSpec((tile_rows, _LANE), lambda i: (i, 0)),
        compiler_params=pltpu.CompilerParams(
            dimension_semantics=("parallel",),
        ),
        cost_estimate=cost,
    )(x2d, w1[0], w1[1], b1, w2.reshape(-1), b2)

    return y2d.reshape(-1)[:N].reshape(N, 1)


def _init_params(key, num_hidden_nodes):
    """Deterministic init mimicking torch.nn.Linear default U(-1/sqrt(fan_in), 1/sqrt(fan_in))."""
    k1, k2, k3, k4 = jax.random.split(key, 4)
    bound1 = 1.0 / jnp.sqrt(2.0)                 # fan_in = 2
    bound2 = 1.0 / jnp.sqrt(float(num_hidden_nodes))
    w1 = jax.random.uniform(k1, (2, num_hidden_nodes), jnp.float32, -bound1, bound1)
    b1 = jax.random.uniform(k2, (num_hidden_nodes,), jnp.float32, -bound1, bound1)
    w2 = jax.random.uniform(k3, (num_hidden_nodes, 1), jnp.float32, -bound2, bound2)
    b2 = jax.random.uniform(k4, (1,), jnp.float32, -bound2, bound2)
    return w1, b1, w2, b2


def _reference_forward(x, w1, b1, w2, b2, activation=jnp.tanh):
    ff = jnp.concatenate([jnp.sin(x), jnp.cos(x)], axis=1)
    h = activation(ff @ w1 + b1[None, :])
    return h @ w2 + b2[None, :]


if __name__ == "__main__":
    N = 3000              # batch of sample points (ragged vs. the lane-dense tile)
    H = 32                # numHiddenNodes
    key = jax.random.PRNGKey(0)
    kx, kp = jax.random.split(key)
    x = jax.random.uniform(kx, (N, 1), jnp.float32, -1.0, 1.0)
    w1, b1, w2, b2 = _init_params(kp, H)

    # activation_Function argument of Fitter.forward -> tanh (typical PINN choice).
    y = fitter_forward(x, w1, b1, w2, b2, activation=jnp.tanh)
    y = jax.block_until_ready(y)

    y_ref = _reference_forward(x, w1, b1, w2, b2, activation=jnp.tanh)
    assert y.shape == (N, 1)
    assert jnp.allclose(y, y_ref, atol=1e-5, rtol=1e-5)
    print("KERNEL_OK")
</pallas_src>

<mosaic_0001>
module attributes {stable_mosaic.version = 11 : i64} {
  func.func @_fitter_kernel(%arg0: i32, %arg1: memref<24x128xf32, #tpu.memory_space<vmem>>, %arg2: memref<32xf32, #tpu.memory_space<smem>>, %arg3: memref<32xf32, #tpu.memory_space<smem>>, %arg4: memref<32xf32, #tpu.memory_space<smem>>, %arg5: memref<32xf32, #tpu.memory_space<smem>>, %arg6: memref<1xf32, #tpu.memory_space<smem>>, %arg7: memref<24x128xf32, #tpu.memory_space<vmem>>) attributes {dimension_semantics = [#tpu.dimension_semantics<parallel>], iteration_bounds = array<i64: 1>, scalar_prefetch = 0 : i64, scratch_operands = 0 : i64, tpu.core_type = #tpu.core_type<tc>, window_params = [{transform_indices = @transform_0, window_bounds = array<i64: 24, 128>}, {transform_indices = @transform_1, window_bounds = array<i64: 32>}, {transform_indices = @transform_2, window_bounds = array<i64: 32>}, {transform_indices = @transform_3, window_bounds = array<i64: 32>}, {transform_indices = @transform_4, window_bounds = array<i64: 32>}, {transform_indices = @transform_5, window_bounds = array<i64: 1>}, {transform_indices = @transform_6, window_bounds = array<i64: 24, 128>}]} {
    %c0 = arith.constant 0 : index
    %c0_0 = arith.constant 0 : index
    %0 = vector.load %arg1[%c0, %c0_0] : memref<24x128xf32, #tpu.memory_space<vmem>>, vector<24x128xf32>
    %1 = math.sin %0 : vector<24x128xf32>
    %2 = math.cos %0 : vector<24x128xf32>
    %cst = arith.constant 0.000000e+00 : f32
    %3 = vector.broadcast %cst : f32 to vector<24x128xf32>
    %c0_1 = arith.constant 0 : index
    %4 = memref.load %arg2[%c0_1] : memref<32xf32, #tpu.memory_space<smem>>
    %5 = vector.broadcast %4 : f32 to vector<24x128xf32>
    %6 = arith.mulf %1, %5 : vector<24x128xf32>
    %c0_2 = arith.constant 0 : index
    %7 = memref.load %arg3[%c0_2] : memref<32xf32, #tpu.memory_space<smem>>
    %8 = vector.broadcast %7 : f32 to vector<24x128xf32>
    %9 = arith.mulf %2, %8 : vector<24x128xf32>
    %10 = arith.addf %6, %9 : vector<24x128xf32>
    %c0_3 = arith.constant 0 : index
    %11 = memref.load %arg4[%c0_3] : memref<32xf32, #tpu.memory_space<smem>>
    %12 = vector.broadcast %11 : f32 to vector<24x128xf32>
    %13 = arith.addf %10, %12 : vector<24x128xf32>
    %14 = math.tanh %13 : vector<24x128xf32>
    %c0_4 = arith.constant 0 : index
    %15 = memref.load %arg5[%c0_4] : memref<32xf32, #tpu.memory_space<smem>>
    %16 = vector.broadcast %15 : f32 to vector<24x128xf32>
    %17 = arith.mulf %14, %16 : vector<24x128xf32>
    %18 = arith.addf %3, %17 : vector<24x128xf32>
    %c1 = arith.constant 1 : index
    %19 = memref.load %arg2[%c1] : memref<32xf32, #tpu.memory_space<smem>>
    %20 = vector.broadcast %19 : f32 to vector<24x128xf32>
    %21 = arith.mulf %1, %20 : vector<24x128xf32>
    %c1_5 = arith.constant 1 : index
    %22 = memref.load %arg3[%c1_5] : memref<32xf32, #tpu.memory_space<smem>>
    %23 = vector.broadcast %22 : f32 to vector<24x128xf32>
    %24 = arith.mulf %2, %23 : vector<24x128xf32>
    %25 = arith.addf %21, %24 : vector<24x128xf32>
    %c1_6 = arith.constant 1 : index
    %26 = memref.load %arg4[%c1_6] : memref<32xf32, #tpu.memory_space<smem>>
    %27 = vector.broadcast %26 : f32 to vector<24x128xf32>
    %28 = arith.addf %25, %27 : vector<24x128xf32>
    %29 = math.tanh %28 : vector<24x128xf32>
    %c1_7 = arith.constant 1 : index
    %30 = memref.load %arg5[%c1_7] : memref<32xf32, #tpu.memory_space<smem>>
    %31 = vector.broadcast %30 : f32 to vector<24x128xf32>
    %32 = arith.mulf %29, %31 : vector<24x128xf32>
    %33 = arith.addf %18, %32 : vector<24x128xf32>
    %c2 = arith.constant 2 : index
    %34 = memref.load %arg2[%c2] : memref<32xf32, #tpu.memory_space<smem>>
    %35 = vector.broadcast %34 : f32 to vector<24x128xf32>
    %36 = arith.mulf %1, %35 : vector<24x128xf32>
    %c2_8 = arith.constant 2 : index
    %37 = memref.load %arg3[%c2_8] : memref<32xf32, #tpu.memory_space<smem>>
    %38 = vector.broadcast %37 : f32 to vector<24x128xf32>
    %39 = arith.mulf %2, %38 : vector<24x128xf32>
    %40 = arith.addf %36, %39 : vector<24x128xf32>
    %c2_9 = arith.constant 2 : index
    %41 = memref.load %arg4[%c2_9] : memref<32xf32, #tpu.memory_space<smem>>
    %42 = vector.broadcast %41 : f32 to vector<24x128xf32>
    %43 = arith.addf %40, %42 : vector<24x128xf32>
    %44 = math.tanh %43 : vector<24x128xf32>
    %c2_10 = arith.constant 2 : index
    %45 = memref.load %arg5[%c2_10] : memref<32xf32, #tpu.memory_space<smem>>
    %46 = vector.broadcast %45 : f32 to vector<24x128xf32>
    %47 = arith.mulf %44, %46 : vector<24x128xf32>
    %48 = arith.addf %33, %47 : vector<24x128xf32>
    %c3 = arith.constant 3 : index
    %49 = memref.load %arg2[%c3] : memref<32xf32, #tpu.memory_space<smem>>
    %50 = vector.broadcast %49 : f32 to vector<24x128xf32>
    %51 = arith.mulf %1, %50 : vector<24x128xf32>
    %c3_11 = arith.constant 3 : index
    %52 = memref.load %arg3[%c3_11] : memref<32xf32, #tpu.memory_space<smem>>
    %53 = vector.broadcast %52 : f32 to vector<24x128xf32>
    %54 = arith.mulf %2, %53 : vector<24x128xf32>
    %55 = arith.addf %51, %54 : vector<24x128xf32>
    %c3_12 = arith.constant 3 : index
    %56 = memref.load %arg4[%c3_12] : memref<32xf32, #tpu.memory_space<smem>>
    %57 = vector.broadcast %56 : f32 to vector<24x128xf32>
    %58 = arith.addf %55, %57 : vector<24x128xf32>
    %59 = math.tanh %58 : vector<24x128xf32>
    %c3_13 = arith.constant 3 : index
    %60 = memref.load %arg5[%c3_13] : memref<32xf32, #tpu.memory_space<smem>>
    %61 = vector.broadcast %60 : f32 to vector<24x128xf32>
    %62 = arith.mulf %59, %61 : vector<24x128xf32>
    %63 = arith.addf %48, %62 : vector<24x128xf32>
    %c4 = arith.constant 4 : index
    %64 = memref.load %arg2[%c4] : memref<32xf32, #tpu.memory_space<smem>>
    %65 = vector.broadcast %64 : f32 to vector<24x128xf32>
    %66 = arith.mulf %1, %65 : vector<24x128xf32>
    %c4_14 = arith.constant 4 : index
    %67 = memref.load %arg3[%c4_14] : memref<32xf32, #tpu.memory_space<smem>>
    %68 = vector.broadcast %67 : f32 to vector<24x128xf32>
    %69 = arith.mulf %2, %68 : vector<24x128xf32>
    %70 = arith.addf %66, %69 : vector<24x128xf32>
    %c4_15 = arith.constant 4 : index
    %71 = memref.load %arg4[%c4_15] : memref<32xf32, #tpu.memory_space<smem>>
    %72 = vector.broadcast %71 : f32 to vector<24x128xf32>
    %73 = arith.addf %70, %72 : vector<24x128xf32>
    %74 = math.tanh %73 : vector<24x128xf32>
    %c4_16 = arith.constant 4 : index
    %75 = memref.load %arg5[%c4_16] : memref<32xf32, #tpu.memory_space<smem>>
    %76 = vector.broadcast %75 : f32 to vector<24x128xf32>
    %77 = arith.mulf %74, %76 : vector<24x128xf32>
    %78 = arith.addf %63, %77 : vector<24x128xf32>
    %c5 = arith.constant 5 : index
    %79 = memref.load %arg2[%c5] : memref<32xf32, #tpu.memory_space<smem>>
    %80 = vector.broadcast %79 : f32 to vector<24x128xf32>
    %81 = arith.mulf %1, %80 : vector<24x128xf32>
    %c5_17 = arith.constant 5 : index
    %82 = memref.load %arg3[%c5_17] : memref<32xf32, #tpu.memory_space<smem>>
    %83 = vector.broadcast %82 : f32 to vector<24x128xf32>
    %84 = arith.mulf %2, %83 : vector<24x128xf32>
    %85 = arith.addf %81, %84 : vector<24x128xf32>
    %c5_18 = arith.constant 5 : index
    %86 = memref.load %arg4[%c5_18] : memref<32xf32, #tpu.memory_space<smem>>
    %87 = vector.broadcast %86 : f32 to vector<24x128xf32>
    %88 = arith.addf %85, %87 : vector<24x128xf32>
    %89 = math.tanh %88 : vector<24x128xf32>
    %c5_19 = arith.constant 5 : index
    %90 = memref.load %arg5[%c5_19] : memref<32xf32, #tpu.memory_space<smem>>
    %91 = vector.broadcast %90 : f32 to vector<24x128xf32>
    %92 = arith.mulf %89, %91 : vector<24x128xf32>
    %93 = arith.addf %78, %92 : vector<24x128xf32>
    %c6 = arith.constant 6 : index
    %94 = memref.load %arg2[%c6] : memref<32xf32, #tpu.memory_space<smem>>
    %95 = vector.broadcast %94 : f32 to vector<24x128xf32>
    %96 = arith.mulf %1, %95 : vector<24x128xf32>
    %c6_20 = arith.constant 6 : index
    %97 = memref.load %arg3[%c6_20] : memref<32xf32, #tpu.memory_space<smem>>
    %98 = vector.broadcast %97 : f32 to vector<24x128xf32>
    %99 = arith.mulf %2, %98 : vector<24x128xf32>
    %100 = arith.addf %96, %99 : vector<24x128xf32>
    %c6_21 = arith.constant 6 : index
    %101 = memref.load %arg4[%c6_21] : memref<32xf32, #tpu.memory_space<smem>>
    %102 = vector.broadcast %101 : f32 to vector<24x128xf32>
    %103 = arith.addf %100, %102 : vector<24x128xf32>
    %104 = math.tanh %103 : vector<24x128xf32>
    %c6_22 = arith.constant 6 : index
    %105 = memref.load %arg5[%c6_22] : memref<32xf32, #tpu.memory_space<smem>>
    %106 = vector.broadcast %105 : f32 to vector<24x128xf32>
    %107 = arith.mulf %104, %106 : vector<24x128xf32>
    %108 = arith.addf %93, %107 : vector<24x128xf32>
    %c7 = arith.constant 7 : index
    %109 = memref.load %arg2[%c7] : memref<32xf32, #tpu.memory_space<smem>>
    %110 = vector.broadcast %109 : f32 to vector<24x128xf32>
    %111 = arith.mulf %1, %110 : vector<24x128xf32>
    %c7_23 = arith.constant 7 : index
    %112 = memref.load %arg3[%c7_23] : memref<32xf32, #tpu.memory_space<smem>>
    %113 = vector.broadcast %112 : f32 to vector<24x128xf32>
    %114 = arith.mulf %2, %113 : vector<24x128xf32>
    %115 = arith.addf %111, %114 : vector<24x128xf32>
    %c7_24 = arith.constant 7 : index
    %116 = memref.load %arg4[%c7_24] : memref<32xf32, #tpu.memory_space<smem>>
    %117 = vector.broadcast %116 : f32 to vector<24x128xf32>
    %118 = arith.addf %115, %117 : vector<24x128xf32>
    %119 = math.tanh %118 : vector<24x128xf32>
    %c7_25 = arith.constant 7 : index
    %120 = memref.load %arg5[%c7_25] : memref<32xf32, #tpu.memory_space<smem>>
    %121 = vector.broadcast %120 : f32 to vector<24x128xf32>
    %122 = arith.mulf %119, %121 : vector<24x128xf32>
    %123 = arith.addf %108, %122 : vector<24x128xf32>
    %c8 = arith.constant 8 : index
    %124 = memref.load %arg2[%c8] : memref<32xf32, #tpu.memory_space<smem>>
    %125 = vector.broadcast %124 : f32 to vector<24x128xf32>
    %126 = arith.mulf %1, %125 : vector<24x128xf32>
    %c8_26 = arith.constant 8 : index
    %127 = memref.load %arg3[%c8_26] : memref<32xf32, #tpu.memory_space<smem>>
    %128 = vector.broadcast %127 : f32 to vector<24x128xf32>
    %129 = arith.mulf %2, %128 : vector<24x128xf32>
    %130 = arith.addf %126, %129 : vector<24x128xf32>
    %c8_27 = arith.constant 8 : index
    %131 = memref.load %arg4[%c8_27] : memref<32xf32, #tpu.memory_space<smem>>
    %132 = vector.broadcast %131 : f32 to vector<24x128xf32>
    %133 = arith.addf %130, %132 : vector<24x128xf32>
    %134 = math.tanh %133 : vector<24x128xf32>
    %c8_28 = arith.constant 8 : index
    %135 = memref.load %arg5[%c8_28] : memref<32xf32, #tpu.memory_space<smem>>
    %136 = vector.broadcast %135 : f32 to vector<24x128xf32>
    %137 = arith.mulf %134, %136 : vector<24x128xf32>
    %138 = arith.addf %123, %137 : vector<24x128xf32>
    %c9 = arith.constant 9 : index
    %139 = memref.load %arg2[%c9] : memref<32xf32, #tpu.memory_space<smem>>
    %140 = vector.broadcast %139 : f32 to vector<24x128xf32>
    %141 = arith.mulf %1, %140 : vector<24x128xf32>
    %c9_29 = arith.constant 9 : index
    %142 = memref.load %arg3[%c9_29] : memref<32xf32, #tpu.memory_space<smem>>
    %143 = vector.broadcast %142 : f32 to vector<24x128xf32>
    %144 = arith.mulf %2, %143 : vector<24x128xf32>
    %145 = arith.addf %141, %144 : vector<24x128xf32>
    %c9_30 = arith.constant 9 : index
    %146 = memref.load %arg4[%c9_30] : memref<32xf32, #tpu.memory_space<smem>>
    %147 = vector.broadcast %146 : f32 to vector<24x128xf32>
    %148 = arith.addf %145, %147 : vector<24x128xf32>
    %149 = math.tanh %148 : vector<24x128xf32>
    %c9_31 = arith.constant 9 : index
    %150 = memref.load %arg5[%c9_31] : memref<32xf32, #tpu.memory_space<smem>>
    %151 = vector.broadcast %150 : f32 to vector<24x128xf32>
    %152 = arith.mulf %149, %151 : vector<24x128xf32>
    %153 = arith.addf %138, %152 : vector<24x128xf32>
    %c10 = arith.constant 10 : index
    %154 = memref.load %arg2[%c10] : memref<32xf32, #tpu.memory_space<smem>>
    %155 = vector.broadcast %154 : f32 to vector<24x128xf32>
    %156 = arith.mulf %1, %155 : vector<24x128xf32>
    %c10_32 = arith.constant 10 : index
    %157 = memref.load %arg3[%c10_32] : memref<32xf32, #tpu.memory_space<smem>>
    %158 = vector.broadcast %157 : f32 to vector<24x128xf32>
    %159 = arith.mulf %2, %158 : vector<24x128xf32>
    %160 = arith.addf %156, %159 : vector<24x128xf32>
    %c10_33 = arith.constant 10 : index
    %161 = memref.load %arg4[%c10_33] : memref<32xf32, #tpu.memory_space<smem>>
    %162 = vector.broadcast %161 : f32 to vector<24x128xf32>
    %163 = arith.addf %160, %162 : vector<24x128xf32>
    %164 = math.tanh %163 : vector<24x128xf32>
    %c10_34 = arith.constant 10 : index
    %165 = memref.load %arg5[%c10_34] : memref<32xf32, #tpu.memory_space<smem>>
    %166 = vector.broadcast %165 : f32 to vector<24x128xf32>
    %167 = arith.mulf %164, %166 : vector<24x128xf32>
    %168 = arith.addf %153, %167 : vector<24x128xf32>
    %c11 = arith.constant 11 : index
    %169 = memref.load %arg2[%c11] : memref<32xf32, #tpu.memory_space<smem>>
    %170 = vector.broadcast %169 : f32 to vector<24x128xf32>
    %171 = arith.mulf %1, %170 : vector<24x128xf32>
    %c11_35 = arith.constant 11 : index
    %172 = memref.load %arg3[%c11_35] : memref<32xf32, #tpu.memory_space<smem>>
    %173 = vector.broadcast %172 : f32 to vector<24x128xf32>
    %174 = arith.mulf %2, %173 : vector<24x128xf32>
    %175 = arith.addf %171, %174 : vector<24x128xf32>
    %c11_36 = arith.constant 11 : index
    %176 = memref.load %arg4[%c11_36] : memref<32xf32, #tpu.memory_space<smem>>
    %177 = vector.broadcast %176 : f32 to vector<24x128xf32>
    %178 = arith.addf %175, %177 : vector<24x128xf32>
    %179 = math.tanh %178 : vector<24x128xf32>
    %c11_37 = arith.constant 11 : index
    %180 = memref.load %arg5[%c11_37] : memref<32xf32, #tpu.memory_space<smem>>
    %181 = vector.broadcast %180 : f32 to vector<24x128xf32>
    %182 = arith.mulf %179, %181 : vector<24x128xf32>
    %183 = arith.addf %168, %182 : vector<24x128xf32>
    %c12 = arith.constant 12 : index
    %184 = memref.load %arg2[%c12] : memref<32xf32, #tpu.memory_space<smem>>
    %185 = vector.broadcast %184 : f32 to vector<24x128xf32>
    %186 = arith.mulf %1, %185 : vector<24x128xf32>
    %c12_38 = arith.constant 12 : index
    %187 = memref.load %arg3[%c12_38] : memref<32xf32, #tpu.memory_space<smem>>
    %188 = vector.broadcast %187 : f32 to vector<24x128xf32>
    %189 = arith.mulf %2, %188 : vector<24x128xf32>
    %190 = arith.addf %186, %189 : vector<24x128xf32>
    %c12_39 = arith.constant 12 : index
    %191 = memref.load %arg4[%c12_39] : memref<32xf32, #tpu.memory_space<smem>>
    %192 = vector.broadcast %191 : f32 to vector<24x128xf32>
    %193 = arith.addf %190, %192 : vector<24x128xf32>
    %194 = math.tanh %193 : vector<24x128xf32>
    %c12_40 = arith.constant 12 : index
    %195 = memref.load %arg5[%c12_40] : memref<32xf32, #tpu.memory_space<smem>>
    %196 = vector.broadcast %195 : f32 to vector<24x128xf32>
    %197 = arith.mulf %194, %196 : vector<24x128xf32>
    %198 = arith.addf %183, %197 : vector<24x128xf32>
    %c13 = arith.constant 13 : index
    %199 = memref.load %arg2[%c13] : memref<32xf32, #tpu.memory_space<smem>>
    %200 = vector.broadcast %199 : f32 to vector<24x128xf32>
    %201 = arith.mulf %1, %200 : vector<24x128xf32>
    %c13_41 = arith.constant 13 : index
    %202 = memref.load %arg3[%c13_41] : memref<32xf32, #tpu.memory_space<smem>>
    %203 = vector.broadcast %202 : f32 to vector<24x128xf32>
    %204 = arith.mulf %2, %203 : vector<24x128xf32>
    %205 = arith.addf %201, %204 : vector<24x128xf32>
    %c13_42 = arith.constant 13 : index
    %206 = memref.load %arg4[%c13_42] : memref<32xf32, #tpu.memory_space<smem>>
    %207 = vector.broadcast %206 : f32 to vector<24x128xf32>
    %208 = arith.addf %205, %207 : vector<24x128xf32>
    %209 = math.tanh %208 : vector<24x128xf32>
    %c13_43 = arith.constant 13 : index
    %210 = memref.load %arg5[%c13_43] : memref<32xf32, #tpu.memory_space<smem>>
    %211 = vector.broadcast %210 : f32 to vector<24x128xf32>
    %212 = arith.mulf %209, %211 : vector<24x128xf32>
    %213 = arith.addf %198, %212 : vector<24x128xf32>
    %c14 = arith.constant 14 : index
    %214 = memref.load %arg2[%c14] : memref<32xf32, #tpu.memory_space<smem>>
    %215 = vector.broadcast %214 : f32 to vector<24x128xf32>
    %216 = arith.mulf %1, %215 : vector<24x128xf32>
    %c14_44 = arith.constant 14 : index
    %217 = memref.load %arg3[%c14_44] : memref<32xf32, #tpu.memory_space<smem>>
    %218 = vector.broadcast %217 : f32 to vector<24x128xf32>
    %219 = arith.mulf %2, %218 : vector<24x128xf32>
    %220 = arith.addf %216, %219 : vector<24x128xf32>
    %c14_45 = arith.constant 14 : index
    %221 = memref.load %arg4[%c14_45] : memref<32xf32, #tpu.memory_space<smem>>
    %222 = vector.broadcast %221 : f32 to vector<24x128xf32>
    %223 = arith.addf %220, %222 : vector<24x128xf32>
    %224 = math.tanh %223 : vector<24x128xf32>
    %c14_46 = arith.constant 14 : index
    %225 = memref.load %arg5[%c14_46] : memref<32xf32, #tpu.memory_space<smem>>
    %226 = vector.broadcast %225 : f32 to vector<24x128xf32>
    %227 = arith.mulf %224, %226 : vector<24x128xf32>
    %228 = arith.addf %213, %227 : vector<24x128xf32>
    %c15 = arith.constant 15 : index
    %229 = memref.load %arg2[%c15] : memref<32xf32, #tpu.memory_space<smem>>
    %230 = vector.broadcast %229 : f32 to vector<24x128xf32>
    %231 = arith.mulf %1, %230 : vector<24x128xf32>
    %c15_47 = arith.constant 15 : index
    %232 = memref.load %arg3[%c15_47] : memref<32xf32, #tpu.memory_space<smem>>
    %233 = vector.broadcast %232 : f32 to vector<24x128xf32>
    %234 = arith.mulf %2, %233 : vector<24x128xf32>
    %235 = arith.addf %231, %234 : vector<24x128xf32>
    %c15_48 = arith.constant 15 : index
    %236 = memref.load %arg4[%c15_48] : memref<32xf32, #tpu.memory_space<smem>>
    %237 = vector.broadcast %236 : f32 to vector<24x128xf32>
    %238 = arith.addf %235, %237 : vector<24x128xf32>
    %239 = math.tanh %238 : vector<24x128xf32>
    %c15_49 = arith.constant 15 : index
    %240 = memref.load %arg5[%c15_49] : memref<32xf32, #tpu.memory_space<smem>>
    %241 = vector.broadcast %240 : f32 to vector<24x128xf32>
    %242 = arith.mulf %239, %241 : vector<24x128xf32>
    %243 = arith.addf %228, %242 : vector<24x128xf32>
    %c16 = arith.constant 16 : index
    %244 = memref.load %arg2[%c16] : memref<32xf32, #tpu.memory_space<smem>>
    %245 = vector.broadcast %244 : f32 to vector<24x128xf32>
    %246 = arith.mulf %1, %245 : vector<24x128xf32>
    %c16_50 = arith.constant 16 : index
    %247 = memref.load %arg3[%c16_50] : memref<32xf32, #tpu.memory_space<smem>>
    %248 = vector.broadcast %247 : f32 to vector<24x128xf32>
    %249 = arith.mulf %2, %248 : vector<24x128xf32>
    %250 = arith.addf %246, %249 : vector<24x128xf32>
    %c16_51 = arith.constant 16 : index
    %251 = memref.load %arg4[%c16_51] : memref<32xf32, #tpu.memory_space<smem>>
    %252 = vector.broadcast %251 : f32 to vector<24x128xf32>
    %253 = arith.addf %250, %252 : vector<24x128xf32>
    %254 = math.tanh %253 : vector<24x128xf32>
    %c16_52 = arith.constant 16 : index
    %255 = memref.load %arg5[%c16_52] : memref<32xf32, #tpu.memory_space<smem>>
    %256 = vector.broadcast %255 : f32 to vector<24x128xf32>
    %257 = arith.mulf %254, %256 : vector<24x128xf32>
    %258 = arith.addf %243, %257 : vector<24x128xf32>
    %c17 = arith.constant 17 : index
    %259 = memref.load %arg2[%c17] : memref<32xf32, #tpu.memory_space<smem>>
    %260 = vector.broadcast %259 : f32 to vector<24x128xf32>
    %261 = arith.mulf %1, %260 : vector<24x128xf32>
    %c17_53 = arith.constant 17 : index
    %262 = memref.load %arg3[%c17_53] : memref<32xf32, #tpu.memory_space<smem>>
    %263 = vector.broadcast %262 : f32 to vector<24x128xf32>
    %264 = arith.mulf %2, %263 : vector<24x128xf32>
    %265 = arith.addf %261, %264 : vector<24x128xf32>
    %c17_54 = arith.constant 17 : index
    %266 = memref.load %arg4[%c17_54] : memref<32xf32, #tpu.memory_space<smem>>
    %267 = vector.broadcast %266 : f32 to vector<24x128xf32>
    %268 = arith.addf %265, %267 : vector<24x128xf32>
    %269 = math.tanh %268 : vector<24x128xf32>
    %c17_55 = arith.constant 17 : index
    %270 = memref.load %arg5[%c17_55] : memref<32xf32, #tpu.memory_space<smem>>
    %271 = vector.broadcast %270 : f32 to vector<24x128xf32>
    %272 = arith.mulf %269, %271 : vector<24x128xf32>
    %273 = arith.addf %258, %272 : vector<24x128xf32>
    %c18 = arith.constant 18 : index
    %274 = memref.load %arg2[%c18] : memref<32xf32, #tpu.memory_space<smem>>
    %275 = vector.broadcast %274 : f32 to vector<24x128xf32>
    %276 = arith.mulf %1, %275 : vector<24x128xf32>
    %c18_56 = arith.constant 18 : index
    %277 = memref.load %arg3[%c18_56] : memref<32xf32, #tpu.memory_space<smem>>
    %278 = vector.broadcast %277 : f32 to vector<24x128xf32>
    %279 = arith.mulf %2, %278 : vector<24x128xf32>
    %280 = arith.addf %276, %279 : vector<24x128xf32>
    %c18_57 = arith.constant 18 : index
    %281 = memref.load %arg4[%c18_57] : memref<32xf32, #tpu.memory_space<smem>>
    %282 = vector.broadcast %281 : f32 to vector<24x128xf32>
    %283 = arith.addf %280, %282 : vector<24x128xf32>
    %284 = math.tanh %283 : vector<24x128xf32>
    %c18_58 = arith.constant 18 : index
    %285 = memref.load %arg5[%c18_58] : memref<32xf32, #tpu.memory_space<smem>>
    %286 = vector.broadcast %285 : f32 to vector<24x128xf32>
    %287 = arith.mulf %284, %286 : vector<24x128xf32>
    %288 = arith.addf %273, %287 : vector<24x128xf32>
    %c19 = arith.constant 19 : index
    %289 = memref.load %arg2[%c19] : memref<32xf32, #tpu.memory_space<smem>>
    %290 = vector.broadcast %289 : f32 to vector<24x128xf32>
    %291 = arith.mulf %1, %290 : vector<24x128xf32>
    %c19_59 = arith.constant 19 : index
    %292 = memref.load %arg3[%c19_59] : memref<32xf32, #tpu.memory_space<smem>>
    %293 = vector.broadcast %292 : f32 to vector<24x128xf32>
    %294 = arith.mulf %2, %293 : vector<24x128xf32>
    %295 = arith.addf %291, %294 : vector<24x128xf32>
    %c19_60 = arith.constant 19 : index
    %296 = memref.load %arg4[%c19_60] : memref<32xf32, #tpu.memory_space<smem>>
    %297 = vector.broadcast %296 : f32 to vector<24x128xf32>
    %298 = arith.addf %295, %297 : vector<24x128xf32>
    %299 = math.tanh %298 : vector<24x128xf32>
    %c19_61 = arith.constant 19 : index
    %300 = memref.load %arg5[%c19_61] : memref<32xf32, #tpu.memory_space<smem>>
    %301 = vector.broadcast %300 : f32 to vector<24x128xf32>
    %302 = arith.mulf %299, %301 : vector<24x128xf32>
    %303 = arith.addf %288, %302 : vector<24x128xf32>
    %c20 = arith.constant 20 : index
    %304 = memref.load %arg2[%c20] : memref<32xf32, #tpu.memory_space<smem>>
    %305 = vector.broadcast %304 : f32 to vector<24x128xf32>
    %306 = arith.mulf %1, %305 : vector<24x128xf32>
    %c20_62 = arith.constant 20 : index
    %307 = memref.load %arg3[%c20_62] : memref<32xf32, #tpu.memory_space<smem>>
    %308 = vector.broadcast %307 : f32 to vector<24x128xf32>
    %309 = arith.mulf %2, %308 : vector<24x128xf32>
    %310 = arith.addf %306, %309 : vector<24x128xf32>
    %c20_63 = arith.constant 20 : index
    %311 = memref.load %arg4[%c20_63] : memref<32xf32, #tpu.memory_space<smem>>
    %312 = vector.broadcast %311 : f32 to vector<24x128xf32>
    %313 = arith.addf %310, %312 : vector<24x128xf32>
    %314 = math.tanh %313 : vector<24x128xf32>
    %c20_64 = arith.constant 20 : index
    %315 = memref.load %arg5[%c20_64] : memref<32xf32, #tpu.memory_space<smem>>
    %316 = vector.broadcast %315 : f32 to vector<24x128xf32>
    %317 = arith.mulf %314, %316 : vector<24x128xf32>
    %318 = arith.addf %303, %317 : vector<24x128xf32>
    %c21 = arith.constant 21 : index
    %319 = memref.load %arg2[%c21] : memref<32xf32, #tpu.memory_space<smem>>
    %320 = vector.broadcast %319 : f32 to vector<24x128xf32>
    %321 = arith.mulf %1, %320 : vector<24x128xf32>
    %c21_65 = arith.constant 21 : index
    %322 = memref.load %arg3[%c21_65] : memref<32xf32, #tpu.memory_space<smem>>
    %323 = vector.broadcast %322 : f32 to vector<24x128xf32>
    %324 = arith.mulf %2, %323 : vector<24x128xf32>
    %325 = arith.addf %321, %324 : vector<24x128xf32>
    %c21_66 = arith.constant 21 : index
    %326 = memref.load %arg4[%c21_66] : memref<32xf32, #tpu.memory_space<smem>>
    %327 = vector.broadcast %326 : f32 to vector<24x128xf32>
    %328 = arith.addf %325, %327 : vector<24x128xf32>
    %329 = math.tanh %328 : vector<24x128xf32>
    %c21_67 = arith.constant 21 : index
    %330 = memref.load %arg5[%c21_67] : memref<32xf32, #tpu.memory_space<smem>>
    %331 = vector.broadcast %330 : f32 to vector<24x128xf32>
    %332 = arith.mulf %329, %331 : vector<24x128xf32>
    %333 = arith.addf %318, %332 : vector<24x128xf32>
    %c22 = arith.constant 22 : index
    %334 = memref.load %arg2[%c22] : memref<32xf32, #tpu.memory_space<smem>>
    %335 = vector.broadcast %334 : f32 to vector<24x128xf32>
    %336 = arith.mulf %1, %335 : vector<24x128xf32>
    %c22_68 = arith.constant 22 : index
    %337 = memref.load %arg3[%c22_68] : memref<32xf32, #tpu.memory_space<smem>>
    %338 = vector.broadcast %337 : f32 to vector<24x128xf32>
    %339 = arith.mulf %2, %338 : vector<24x128xf32>
    %340 = arith.addf %336, %339 : vector<24x128xf32>
    %c22_69 = arith.constant 22 : index
    %341 = memref.load %arg4[%c22_69] : memref<32xf32, #tpu.memory_space<smem>>
    %342 = vector.broadcast %341 : f32 to vector<24x128xf32>
    %343 = arith.addf %340, %342 : vector<24x128xf32>
    %344 = math.tanh %343 : vector<24x128xf32>
    %c22_70 = arith.constant 22 : index
    %345 = memref.load %arg5[%c22_70] : memref<32xf32, #tpu.memory_space<smem>>
    %346 = vector.broadcast %345 : f32 to vector<24x128xf32>
    %347 = arith.mulf %344, %346 : vector<24x128xf32>
    %348 = arith.addf %333, %347 : vector<24x128xf32>
    %c23 = arith.constant 23 : index
    %349 = memref.load %arg2[%c23] : memref<32xf32, #tpu.memory_space<smem>>
    %350 = vector.broadcast %349 : f32 to vector<24x128xf32>
    %351 = arith.mulf %1, %350 : vector<24x128xf32>
    %c23_71 = arith.constant 23 : index
    %352 = memref.load %arg3[%c23_71] : memref<32xf32, #tpu.memory_space<smem>>
    %353 = vector.broadcast %352 : f32 to vector<24x128xf32>
    %354 = arith.mulf %2, %353 : vector<24x128xf32>
    %355 = arith.addf %351, %354 : vector<24x128xf32>
    %c23_72 = arith.constant 23 : index
    %356 = memref.load %arg4[%c23_72] : memref<32xf32, #tpu.memory_space<smem>>
    %357 = vector.broadcast %356 : f32 to vector<24x128xf32>
    %358 = arith.addf %355, %357 : vector<24x128xf32>
    %359 = math.tanh %358 : vector<24x128xf32>
    %c23_73 = arith.constant 23 : index
    %360 = memref.load %arg5[%c23_73] : memref<32xf32, #tpu.memory_space<smem>>
    %361 = vector.broadcast %360 : f32 to vector<24x128xf32>
    %362 = arith.mulf %359, %361 : vector<24x128xf32>
    %363 = arith.addf %348, %362 : vector<24x128xf32>
    %c24 = arith.constant 24 : index
    %364 = memref.load %arg2[%c24] : memref<32xf32, #tpu.memory_space<smem>>
    %365 = vector.broadcast %364 : f32 to vector<24x128xf32>
    %366 = arith.mulf %1, %365 : vector<24x128xf32>
    %c24_74 = arith.constant 24 : index
    %367 = memref.load %arg3[%c24_74] : memref<32xf32, #tpu.memory_space<smem>>
    %368 = vector.broadcast %367 : f32 to vector<24x128xf32>
    %369 = arith.mulf %2, %368 : vector<24x128xf32>
    %370 = arith.addf %366, %369 : vector<24x128xf32>
    %c24_75 = arith.constant 24 : index
    %371 = memref.load %arg4[%c24_75] : memref<32xf32, #tpu.memory_space<smem>>
    %372 = vector.broadcast %371 : f32 to vector<24x128xf32>
    %373 = arith.addf %370, %372 : vector<24x128xf32>
    %374 = math.tanh %373 : vector<24x128xf32>
    %c24_76 = arith.constant 24 : index
    %375 = memref.load %arg5[%c24_76] : memref<32xf32, #tpu.memory_space<smem>>
    %376 = vector.broadcast %375 : f32 to vector<24x128xf32>
    %377 = arith.mulf %374, %376 : vector<24x128xf32>
    %378 = arith.addf %363, %377 : vector<24x128xf32>
    %c25 = arith.constant 25 : index
    %379 = memref.load %arg2[%c25] : memref<32xf32, #tpu.memory_space<smem>>
    %380 = vector.broadcast %379 : f32 to vector<24x128xf32>
    %381 = arith.mulf %1, %380 : vector<24x128xf32>
    %c25_77 = arith.constant 25 : index
    %382 = memref.load %arg3[%c25_77] : memref<32xf32, #tpu.memory_space<smem>>
    %383 = vector.broadcast %382 : f32 to vector<24x128xf32>
    %384 = arith.mulf %2, %383 : vector<24x128xf32>
    %385 = arith.addf %381, %384 : vector<24x128xf32>
    %c25_78 = arith.constant 25 : index
    %386 = memref.load %arg4[%c25_78] : memref<32xf32, #tpu.memory_space<smem>>
    %387 = vector.broadcast %386 : f32 to vector<24x128xf32>
    %388 = arith.addf %385, %387 : vector<24x128xf32>
    %389 = math.tanh %388 : vector<24x128xf32>
    %c25_79 = arith.constant 25 : index
    %390 = memref.load %arg5[%c25_79] : memref<32xf32, #tpu.memory_space<smem>>
    %391 = vector.broadcast %390 : f32 to vector<24x128xf32>
    %392 = arith.mulf %389, %391 : vector<24x128xf32>
    %393 = arith.addf %378, %392 : vector<24x128xf32>
    %c26 = arith.constant 26 : index
    %394 = memref.load %arg2[%c26] : memref<32xf32, #tpu.memory_space<smem>>
    %395 = vector.broadcast %394 : f32 to vector<24x128xf32>
    %396 = arith.mulf %1, %395 : vector<24x128xf32>
    %c26_80 = arith.constant 26 : index
    %397 = memref.load %arg3[%c26_80] : memref<32xf32, #tpu.memory_space<smem>>
    %398 = vector.broadcast %397 : f32 to vector<24x128xf32>
    %399 = arith.mulf %2, %398 : vector<24x128xf32>
    %400 = arith.addf %396, %399 : vector<24x128xf32>
    %c26_81 = arith.constant 26 : index
    %401 = memref.load %arg4[%c26_81] : memref<32xf32, #tpu.memory_space<smem>>
    %402 = vector.broadcast %401 : f32 to vector<24x128xf32>
    %403 = arith.addf %400, %402 : vector<24x128xf32>
    %404 = math.tanh %403 : vector<24x128xf32>
    %c26_82 = arith.constant 26 : index
    %405 = memref.load %arg5[%c26_82] : memref<32xf32, #tpu.memory_space<smem>>
    %406 = vector.broadcast %405 : f32 to vector<24x128xf32>
    %407 = arith.mulf %404, %406 : vector<24x128xf32>
    %408 = arith.addf %393, %407 : vector<24x128xf32>
    %c27 = arith.constant 27 : index
    %409 = memref.load %arg2[%c27] : memref<32xf32, #tpu.memory_space<smem>>
    %410 = vector.broadcast %409 : f32 to vector<24x128xf32>
    %411 = arith.mulf %1, %410 : vector<24x128xf32>
    %c27_83 = arith.constant 27 : index
    %412 = memref.load %arg3[%c27_83] : memref<32xf32, #tpu.memory_space<smem>>
    %413 = vector.broadcast %412 : f32 to vector<24x128xf32>
    %414 = arith.mulf %2, %413 : vector<24x128xf32>
    %415 = arith.addf %411, %414 : vector<24x128xf32>
    %c27_84 = arith.constant 27 : index
    %416 = memref.load %arg4[%c27_84] : memref<32xf32, #tpu.memory_space<smem>>
    %417 = vector.broadcast %416 : f32 to vector<24x128xf32>
    %418 = arith.addf %415, %417 : vector<24x128xf32>
    %419 = math.tanh %418 : vector<24x128xf32>
    %c27_85 = arith.constant 27 : index
    %420 = memref.load %arg5[%c27_85] : memref<32xf32, #tpu.memory_space<smem>>
    %421 = vector.broadcast %420 : f32 to vector<24x128xf32>
    %422 = arith.mulf %419, %421 : vector<24x128xf32>
    %423 = arith.addf %408, %422 : vector<24x128xf32>
    %c28 = arith.constant 28 : index
    %424 = memref.load %arg2[%c28] : memref<32xf32, #tpu.memory_space<smem>>
    %425 = vector.broadcast %424 : f32 to vector<24x128xf32>
    %426 = arith.mulf %1, %425 : vector<24x128xf32>
    %c28_86 = arith.constant 28 : index
    %427 = memref.load %arg3[%c28_86] : memref<32xf32, #tpu.memory_space<smem>>
    %428 = vector.broadcast %427 : f32 to vector<24x128xf32>
    %429 = arith.mulf %2, %428 : vector<24x128xf32>
    %430 = arith.addf %426, %429 : vector<24x128xf32>
    %c28_87 = arith.constant 28 : index
    %431 = memref.load %arg4[%c28_87] : memref<32xf32, #tpu.memory_space<smem>>
    %432 = vector.broadcast %431 : f32 to vector<24x128xf32>
    %433 = arith.addf %430, %432 : vector<24x128xf32>
    %434 = math.tanh %433 : vector<24x128xf32>
    %c28_88 = arith.constant 28 : index
    %435 = memref.load %arg5[%c28_88] : memref<32xf32, #tpu.memory_space<smem>>
    %436 = vector.broadcast %435 : f32 to vector<24x128xf32>
    %437 = arith.mulf %434, %436 : vector<24x128xf32>
    %438 = arith.addf %423, %437 : vector<24x128xf32>
    %c29 = arith.constant 29 : index
    %439 = memref.load %arg2[%c29] : memref<32xf32, #tpu.memory_space<smem>>
    %440 = vector.broadcast %439 : f32 to vector<24x128xf32>
    %441 = arith.mulf %1, %440 : vector<24x128xf32>
    %c29_89 = arith.constant 29 : index
    %442 = memref.load %arg3[%c29_89] : memref<32xf32, #tpu.memory_space<smem>>
    %443 = vector.broadcast %442 : f32 to vector<24x128xf32>
    %444 = arith.mulf %2, %443 : vector<24x128xf32>
    %445 = arith.addf %441, %444 : vector<24x128xf32>
    %c29_90 = arith.constant 29 : index
    %446 = memref.load %arg4[%c29_90] : memref<32xf32, #tpu.memory_space<smem>>
    %447 = vector.broadcast %446 : f32 to vector<24x128xf32>
    %448 = arith.addf %445, %447 : vector<24x128xf32>
    %449 = math.tanh %448 : vector<24x128xf32>
    %c29_91 = arith.constant 29 : index
    %450 = memref.load %arg5[%c29_91] : memref<32xf32, #tpu.memory_space<smem>>
    %451 = vector.broadcast %450 : f32 to vector<24x128xf32>
    %452 = arith.mulf %449, %451 : vector<24x128xf32>
    %453 = arith.addf %438, %452 : vector<24x128xf32>
    %c30 = arith.constant 30 : index
    %454 = memref.load %arg2[%c30] : memref<32xf32, #tpu.memory_space<smem>>
    %455 = vector.broadcast %454 : f32 to vector<24x128xf32>
    %456 = arith.mulf %1, %455 : vector<24x128xf32>
    %c30_92 = arith.constant 30 : index
    %457 = memref.load %arg3[%c30_92] : memref<32xf32, #tpu.memory_space<smem>>
    %458 = vector.broadcast %457 : f32 to vector<24x128xf32>
    %459 = arith.mulf %2, %458 : vector<24x128xf32>
    %460 = arith.addf %456, %459 : vector<24x128xf32>
    %c30_93 = arith.constant 30 : index
    %461 = memref.load %arg4[%c30_93] : memref<32xf32, #tpu.memory_space<smem>>
    %462 = vector.broadcast %461 : f32 to vector<24x128xf32>
    %463 = arith.addf %460, %462 : vector<24x128xf32>
    %464 = math.tanh %463 : vector<24x128xf32>
    %c30_94 = arith.constant 30 : index
    %465 = memref.load %arg5[%c30_94] : memref<32xf32, #tpu.memory_space<smem>>
    %466 = vector.broadcast %465 : f32 to vector<24x128xf32>
    %467 = arith.mulf %464, %466 : vector<24x128xf32>
    %468 = arith.addf %453, %467 : vector<24x128xf32>
    %c31 = arith.constant 31 : index
    %469 = memref.load %arg2[%c31] : memref<32xf32, #tpu.memory_space<smem>>
    %470 = vector.broadcast %469 : f32 to vector<24x128xf32>
    %471 = arith.mulf %1, %470 : vector<24x128xf32>
    %c31_95 = arith.constant 31 : index
    %472 = memref.load %arg3[%c31_95] : memref<32xf32, #tpu.memory_space<smem>>
    %473 = vector.broadcast %472 : f32 to vector<24x128xf32>
    %474 = arith.mulf %2, %473 : vector<24x128xf32>
    %475 = arith.addf %471, %474 : vector<24x128xf32>
    %c31_96 = arith.constant 31 : index
    %476 = memref.load %arg4[%c31_96] : memref<32xf32, #tpu.memory_space<smem>>
    %477 = vector.broadcast %476 : f32 to vector<24x128xf32>
    %478 = arith.addf %475, %477 : vector<24x128xf32>
    %479 = math.tanh %478 : vector<24x128xf32>
    %c31_97 = arith.constant 31 : index
    %480 = memref.load %arg5[%c31_97] : memref<32xf32, #tpu.memory_space<smem>>
    %481 = vector.broadcast %480 : f32 to vector<24x128xf32>
    %482 = arith.mulf %479, %481 : vector<24x128xf32>
    %483 = arith.addf %468, %482 : vector<24x128xf32>
    %c0_98 = arith.constant 0 : index
    %484 = memref.load %arg6[%c0_98] : memref<1xf32, #tpu.memory_space<smem>>
    %485 = vector.broadcast %484 : f32 to vector<24x128xf32>
    %486 = arith.addf %483, %485 : vector<24x128xf32>
    %c0_99 = arith.constant 0 : index
    %c0_100 = arith.constant 0 : index
    %487 = vector.load %arg7[%c0_99, %c0_100] : memref<24x128xf32, #tpu.memory_space<vmem>>, vector<24x128xf32>
    tpu.vector_store %arg7[%c0_99, %c0_100], %486 {strides = array<i32>} : memref<24x128xf32, #tpu.memory_space<vmem>>, vector<24x128xf32>,
    return
  }
  func.func @transform_0(%arg0: i32) -> (i32, i32) {
    %c0_i32 = arith.constant 0 : i32
    %c0_i32_0 = arith.constant 0 : i32
    return %arg0, %c0_i32 : i32, i32
  }
  func.func @transform_1(%arg0: i32) -> i32 {
    %c0_i32 = arith.constant 0 : i32
    %c0_i32_0 = arith.constant 0 : i32
    return %c0_i32 : i32
  }
  func.func @transform_2(%arg0: i32) -> i32 {
    %c0_i32 = arith.constant 0 : i32
    %c0_i32_0 = arith.constant 0 : i32
    return %c0_i32 : i32
  }
  func.func @transform_3(%arg0: i32) -> i32 {
    %c0_i32 = arith.constant 0 : i32
    %c0_i32_0 = arith.constant 0 : i32
    return %c0_i32 : i32
  }
  func.func @transform_4(%arg0: i32) -> i32 {
    %c0_i32 = arith.constant 0 : i32
    %c0_i32_0 = arith.constant 0 : i32
    return %c0_i32 : i32
  }
  func.func @transform_5(%arg0: i32) -> i32 {
    %c0_i32 = arith.constant 0 : i32
    %c0_i32_0 = arith.constant 0 : i32
    return %c0_i32 : i32
  }
  func.func @transform_6(%arg0: i32) -> (i32, i32) {
    %c0_i32 = arith.constant 0 : i32
    %c0_i32_0 = arith.constant 0 : i32
    return %arg0, %c0_i32 : i32, i32
  }
}

</mosaic_0001>

<llo_original>
// kernel: tpu_custom_call.1
$region0: #{tpu_custom_call.1}
  #allocation0 [shape = 'u32[]', space=smem, size = 0x4, offset = 0x4, fixed_abs, tag = 'smem constant byte address 0x4 - core index']
  #allocation1 [shape = 'u32[144,128]{1,0:T(1,128)}', space=vmem, size = 0x12000, scoped, tag = 'internal scratch']
  #allocation2 [shape = 'f32[1]{0:T(128)S(6)}', space=smem, size = 0x200, scoped, tag = 'scoped memory for tpu_custom_call.1']
  %s0 = inlined_call_operand.hbm [shape: f32[24,128], index: 0, kind: input, shape index: {}]
  %s1 = inlined_call_operand.vmem [shape: f32[32], index: 1, kind: input, shape index: {}]
  %s2 = inlined_call_operand.vmem [shape: f32[32], index: 2, kind: input, shape index: {}]
  %s3 = inlined_call_operand.vmem [shape: f32[32], index: 3, kind: input, shape index: {}]
  %s4 = inlined_call_operand.vmem [shape: f32[32], index: 4, kind: input, shape index: {}]
  %s5 = inlined_call_operand.<no memory space> [shape: f32[1], index: 5, kind: input, shape index: {}]
  %s6 = inlined_call_operand.hbm [shape: f32[24,128], index: 6, kind: output, shape index: {}]
  %s7 = sld [smem:[#allocation0]]
  $region54: #{tpu_custom_call.1} parent=0
    _
  %s9 = ssub.s32 1, %s7
  %s10 = scalar_select 0, %s9, %s7
  %11 = sst [smem:[#allocation2]] %s5
  $region1: #{tpu_custom_call.1} parent=0
    #allocation3 [shape = 'u8[12288]{0}', space=vmem, size = 0x3000, scoped, tag = 'input window, operand 0, single buffered']
    #allocation4 [shape = 's32[1]{0}', space=sflag, size = 0x4, scoped, tag = 'scoped memory for tpu_custom_call.1']
    #allocation5 [shape = 's32[1]{0}', space=sflag, size = 0x4, scoped, tag = 'scoped memory for tpu_custom_call.1']
    #allocation6 [shape = 's32[1]{0}', space=sflag, size = 0x4, scoped, tag = 'scoped memory for tpu_custom_call.1']
    #allocation7 [shape = 'u8[512]{0}', space=smem, size = 0x200, scoped, tag = 'input window, operand 1, single buffered']
    #allocation8 [shape = 'u8[512]{0}', space=smem, size = 0x200, scoped, tag = 'input window, operand 2, single buffered']
    #allocation9 [shape = 's32[1]{0}', space=sflag, size = 0x4, scoped, tag = 'scoped memory for tpu_custom_call.1']
    #allocation10 [shape = 'u8[512]{0}', space=smem, size = 0x200, scoped, tag = 'input window, operand 3, single buffered']
    #allocation11 [shape = 'u8[512]{0}', space=smem, size = 0x200, scoped, tag = 'input window, operand 4, single buffered']
    #allocation12 [shape = 's32[1]{0}', space=sflag, size = 0x4, scoped, tag = 'scoped memory for tpu_custom_call.1']
    #allocation13 [shape = 'u8[12288]{0}', space=vmem, size = 0x3000, scoped, tag = 'output window, operand 0, single buffered']
    %12 = vsyncpa [#allocation4], 0
    %13 = vsyncpa [#allocation6], 0
    %14 = vsyncpa [#allocation9], 0
    %15 = vsyncpa [#allocation12], 0
    %16 = vsyncpa [#allocation5], 0
    // Predicated region
    $region2: #{tpu_custom_call.1} parent=1 // pred_check
      _
    $region3: #{tpu_custom_call.1} parent=1 // pred_check_branch
      %18 = sbr.rel (0) target = $region5
    $region4: #{tpu_custom_call.1} parent=1 // pred_region
      %s20 = ssub.s32 384, 384
      %21 = vsyncadd [#allocation4], %s20
      %s22 = sshll.u32 [#allocation3], 4
      %s23 = int_to_ptr.vmem [resolvable:$true] %s22
      %28 = dma.hbm_to_vmem [thread:$0]  %s0, 384, %s23, [#allocation4], 128, 128, 8
    $region5: #{tpu_custom_call.1} parent=1 // pred_fallthru
      _
    // Predicated region
    $region6: #{tpu_custom_call.1} parent=1 // pred_check
      _
    $region7: #{tpu_custom_call.1} parent=1 // pred_check_branch
      %30 = sbr.rel (0) target = $region9
    $region8: #{tpu_custom_call.1} parent=1 // pred_region
      %s32 = ssub.s32 16, 16
      %33 = vsyncadd [#allocation6], %s32
      %s35 = sshll.u32 %s1, 4
      %s36 = int_to_ptr.vmem [resolvable:$true] %s35
      %38 = dma.vmem_to_smem %s36, 16, [#allocation7], [#allocation6]
    $region9: #{tpu_custom_call.1} parent=1 // pred_fallthru
      _
    // Predicated region
    $region10: #{tpu_custom_call.1} parent=1 // pred_check
      _
    $region11: #{tpu_custom_call.1} parent=1 // pred_check_branch
      %40 = sbr.rel (0) target = $region13
    $region12: #{tpu_custom_call.1} parent=1 // pred_region
      %s42 = ssub.s32 16, 16
      %43 = vsyncadd [#allocation9], %s42
      %s45 = sshll.u32 %s2, 4
      %s46 = int_to_ptr.vmem [resolvable:$true] %s45
      %48 = dma.vmem_to_smem %s46, 16, [#allocation8], [#allocation9]
    $region13: #{tpu_custom_call.1} parent=1 // pred_fallthru
      _
    // Predicated region
    $region14: #{tpu_custom_call.1} parent=1 // pred_check
      _
    $region15: #{tpu_custom_call.1} parent=1 // pred_check_branch
      %50 = sbr.rel (0) target = $region17
    $region16: #{tpu_custom_call.1} parent=1 // pred_region
      %s52 = ssub.s32 16, 16
      %53 = vsyncadd [#allocation9], %s52
      %s55 = sshll.u32 %s3, 4
      %s56 = int_to_ptr.vmem [resolvable:$true] %s55
      %58 = dma.vmem_to_smem %s56, 16, [#allocation10], [#allocation9]
    $region17: #{tpu_custom_call.1} parent=1 // pred_fallthru
      _
    // Predicated region
    $region18: #{tpu_custom_call.1} parent=1 // pred_check
      _
    $region19: #{tpu_custom_call.1} parent=1 // pred_check_branch
      %60 = sbr.rel (0) target = $region21
    $region20: #{tpu_custom_call.1} parent=1 // pred_region
      %s62 = ssub.s32 16, 16
      %63 = vsyncadd [#allocation12], %s62
      %s65 = sshll.u32 %s4, 4
      %s66 = int_to_ptr.vmem [resolvable:$true] %s65
      %68 = dma.vmem_to_smem %s66, 16, [#allocation11], [#allocation12]
    $region21: #{tpu_custom_call.1} parent=1 // pred_fallthru
      _
    // Predicated region
    $region22: #{tpu_custom_call.1} parent=1 // pred_check
      _
    $region23: #{tpu_custom_call.1} parent=1 // pred_check_branch
      %70 = sbr.rel (0) target = $region25
    $region24: #{tpu_custom_call.1} parent=1 // pred_region
      _
    $region25: #{tpu_custom_call.1} parent=1 // pred_fallthru
      _
    // Predicated region
    $region26: #{tpu_custom_call.1} parent=1 // pred_check
      _
    $region27: #{tpu_custom_call.1} parent=1 // pred_check_branch
      %72 = sbr.rel (0) target = $region29
    $region28: #{tpu_custom_call.1} parent=1 // pred_region
      %73 = dma.done [#allocation4], 384
    $region29: #{tpu_custom_call.1} parent=1 // pred_fallthru
      _
    // Predicated region
    $region30: #{tpu_custom_call.1} parent=1 // pred_check
      _
    $region31: #{tpu_custom_call.1} parent=1 // pred_check_branch
      %75 = sbr.rel (0) target = $region33
    $region32: #{tpu_custom_call.1} parent=1 // pred_region
      %76 = dma.done [#allocation6], 16
    $region33: #{tpu_custom_call.1} parent=1 // pred_fallthru
      _
    // Predicated region
    $region34: #{tpu_custom_call.1} parent=1 // pred_check
      _
    $region35: #{tpu_custom_call.1} parent=1 // pred_check_branch
      %78 = sbr.rel (0) target = $region37
    $region36: #{tpu_custom_call.1} parent=1 // pred_region
      %79 = dma.done [#allocation9], 16
    $region37: #{tpu_custom_call.1} parent=1 // pred_fallthru
      _
    // Predicated region
    $region38: #{tpu_custom_call.1} parent=1 // pred_check
      _
    $region39: #{tpu_custom_call.1} parent=1 // pred_check_branch
      %81 = sbr.rel (0) target = $region41
    $region40: #{tpu_custom_call.1} parent=1 // pred_region
      %82 = dma.done [#allocation9], 16
    $region41: #{tpu_custom_call.1} parent=1 // pred_fallthru
      _
    // Predicated region
    $region42: #{tpu_custom_call.1} parent=1 // pred_check
      _
    $region43: #{tpu_custom_call.1} parent=1 // pred_check_branch
      %84 = sbr.rel (0) target = $region45
    $region44: #{tpu_custom_call.1} parent=1 // pred_region
      %85 = dma.done [#allocation12], 16
    $region45: #{tpu_custom_call.1} parent=1 // pred_fallthru
      _
    %86 = sfence
    %v87 = vld [vmem:[#allocation3] sm:$0xff]
    %v88 = vld [vmem:[#allocation3 + $0x8] sm:$0xff]
    %v89 = vld [vmem:[#allocation3 + $0x10] sm:$0xff]
    %v90 = vand.u32 2147483647, %v87
    %vm91 = vcmp.le.f32.partialorder %v90, 0.7853982
    %vm92 = vcmp.lt.s32.totalorder %v87, 0
    %v93 = vand.u32 %v87, 2139095040
    %v94 = vshrl.u32 %v93, 23
    %v95 = vsub.s32 %v94, 127
    %v96 = vand.u32 2147483647, %v87
    %v97 = vand.u32 %v96, 8388607
    %v98 = vor.u32 %v97, 8388608
    %v99 = vsub.s32 0, %v98
    %v100 = vadd.s32 %v95, 1
    %vm101 = vcmp.gt.s32.totalorder %v100, 0
    %v102 = vsel %vm101, %v100, 0
    %v103 = vshrl.u32 %v102, 5
    %v104 = vand.u32 %v102, 31
    %v105 = vsub.s32 32, %v104
    %v106 = vshrl.u32 683565275, %v105
    %v107 = vshll.u32 683565275, %v104
    %v108 = vshrl.u32 2475754826, %v105
    %v109 = vor.u32 %v107, %v108
    %v110 = vshll.u32 2475754826, %v104
    %v111 = vshrl.u32 2131351028, %v105
    %v112 = vor.u32 %v110, %v111
    %v113 = vshll.u32 2131351028, %v104
    %v114 = vshrl.u32 2102212464, %v105
    %v115 = vor.u32 %v113, %v114
    %v116 = vshll.u32 2102212464, %v104
    %v117 = vshrl.u32 920167782, %v105
    %v118 = vor.u32 %v116, %v117
    %v119 = vshll.u32 920167782, %v104
    %v120 = vshrl.u32 1326507024, %v105
    %v121 = vor.u32 %v119, %v120
    %vm122 = vcmp.lt.s32.totalorder %v103, 1
    %vm123 = vcmp.lt.s32.totalorder %v103, 2
    %vm124 = vcmp.lt.s32.totalorder %v103, 3
    %vm125 = vcmp.lt.s32.totalorder %v103, 4
    %v126 = vsel %vm122, %v106, %v109
    %v127 = vsel %vm125, %v115, 2102212464
    %v128 = vsel %vm124, %v112, %v127
    %v129 = vsel %vm123, %v126, %v128
    %v130 = vsel %vm122, %v109, %v112
    %v131 = vsel %vm125, %v118, 920167782
    %v132 = vsel %vm124, %v115, %v131
    %v133 = vsel %vm123, %v130, %v132
    %v134 = vsel %vm122, %v112, %v115
    %v135 = vsel %vm125, %v121, 1326507024
    %v136 = vsel %vm124, %v118, %v135
    %v137 = vsel %vm123, %v134, %v136
    %v138 = vshll.u32 %v98, 8
    %v139 = vmul.u32.u64.compose %v138, %v137
    %v140 = vextract.low.u32 %v139
    %v141 = vextract.high.u32 %v139
    %v142 = vmul.u32.u64.compose %v138, %v133
    %v143 = vextract.low.u32 %v142
    %v144 = vextract.high.u32 %v142
    %v145 = vmul.u32 %v138, %v129
    %v146 = vadd.s32 %v141, %v143
    %vm147 = vc.u32 %v141, %v143
    %v148 = vadd.s32 %v144, 1
    %v149 = vsel %vm147, %v148, %v144
    %v150 = vadd.s32 %v145, %v149
    %v151 = vadd.s32 %v150, 536870912
    %v152 = vshrl.u32 %v151, 30
    %v153 = vshll.u32 %v152, 30
    %v154 = vsub.s32 %v150, %v153
    %vm155 = vcmp.lt.s32.totalorder %v154, 0
    %v156 = vsub.s32 0, %v154
    %v157 = vsel %vm155, %v156, %v154
    %v158 = vclz %v157
    %v159 = vsub.s32 %v158, 2
    %vm160 = vcmp.gt.s32.totalorder 0, %v159
    %v161 = vsel %vm160, 0, %v159
    %v162 = vsub.s32 32, %v161
    %v163 = vshll.u32 %v154, %v161
    %v164 = vshrl.u32 %v146, %v162
    %v165 = vor.u32 %v163, %v164
    %v166 = vsub.s32 4294967266, %v161
    %v167 = vadd.s32 %v166, 127
    %v168 = vshll.u32 %v167, 23
    %v169 = vor.u32 4788187, %v168
    %v170 = vand.u32 2147483647, %v169
    %v172 = vcvt.s32.f32 %v165
    %v173 = vmul.f32 %v172, %v170
    %v174 = vxor.u32 %v173, 2147483648
    %v175 = vsel %vm92, %v174, %v173
    %v176 = vsub.s32 4, %v152
    %v177 = vsel %vm92, %v176, %v152
    %v178 = vsel %vm91, %v87, %v175
    %v179 = vsel %vm91, 0, %v177
    %v180 = vcosq.f32.pop %v178
    %v181 = vsinq.f32.pop %v178
    %vm182 = vweird.f32 %v87
    %v183 = vadd.s32 %v179, 3
    %v184 = vand.u32 %v183, 3
    %vm185 = vcmp.lt.s32.totalorder %v184, 2
    %vm186 = vcmp.eq.s32.totalorder %v184, 0
    %v187 = vxor.u32 %v181, 2147483648
    %v188 = vsel %vm186, %v180, %v187
    %vm189 = vcmp.eq.s32.totalorder %v184, 2
    %v190 = vxor.u32 %v180, 2147483648
    %v191 = vsel %vm189, %v190, %v181
    %v192 = vsel %vm185, %v188, %v191
    %v193 = vsel %vm182, nan, %v192
    %v194 = vand.u32 2147483647, %v88
    %vm195 = vcmp.le.f32.partialorder %v194, 0.7853982
    %vm196 = vcmp.lt.s32.totalorder %v88, 0
    %v197 = vand.u32 %v88, 2139095040
    %v198 = vshrl.u32 %v197, 23
    %v199 = vsub.s32 %v198, 127
    %v200 = vand.u32 2147483647, %v88
    %v201 = vand.u32 %v200, 8388607
    %v202 = vor.u32 %v201, 8388608
    %v203 = vsub.s32 0, %v202
    %v204 = vadd.s32 %v199, 1
    %vm205 = vcmp.gt.s32.totalorder %v204, 0
    %v206 = vsel %vm205, %v204, 0
    %v207 = vshrl.u32 %v206, 5
    %v208 = vand.u32 %v206, 31
    %v209 = vsub.s32 32, %v208
    %v210 = vshrl.u32 683565275, %v209
    %v211 = vshll.u32 683565275, %v208
    %v212 = vshrl.u32 2475754826, %v209
    %v213 = vor.u32 %v211, %v212
    %v214 = vshll.u32 2475754826, %v208
    %v215 = vshrl.u32 2131351028, %v209
    %v216 = vor.u32 %v214, %v215
    %v217 = vshll.u32 2131351028, %v208
    %v218 = vshrl.u32 2102212464, %v209
    %v219 = vor.u32 %v217, %v218
    %v220 = vshll.u32 2102212464, %v208
    %v221 = vshrl.u32 920167782, %v209
    %v222 = vor.u32 %v220, %v221
    %v223 = vshll.u32 920167782, %v208
    %v224 = vshrl.u32 1326507024, %v209
    %v225 = vor.u32 %v223, %v224
    %vm226 = vcmp.lt.s32.totalorder %v207, 1
    %vm227 = vcmp.lt.s32.totalorder %v207, 2
    %vm228 = vcmp.lt.s32.totalorder %v207, 3
    %vm229 = vcmp.lt.s32.totalorder %v207, 4
    %v230 = vsel %vm226, %v210, %v213
    %v231 = vsel %vm229, %v219, 2102212464
    %v232 = vsel %vm228, %v216, %v231
    %v233 = vsel %vm227, %v230, %v232
    %v234 = vsel %vm226, %v213, %v216
    %v235 = vsel %vm229, %v222, 920167782
    %v236 = vsel %vm228, %v219, %v235
    %v237 = vsel %vm227, %v234, %v236
    %v238 = vsel %vm226, %v216, %v219
    %v239 = vsel %vm229, %v225, 1326507024
    %v240 = vsel %vm228, %v222, %v239
    %v241 = vsel %vm227, %v238, %v240
    %v242 = vshll.u32 %v202, 8
    %v243 = vmul.u32.u64.compose %v242, %v241
    %v244 = vextract.low.u32 %v243
    %v245 = vextract.high.u32 %v243
    %v246 = vmul.u32.u64.compose %v242, %v237
    %v247 = vextract.low.u32 %v246
    %v248 = vextract.high.u32 %v246
    %v249 = vmul.u32 %v242, %v233
    %v250 = vadd.s32 %v245, %v247
    %vm251 = vc.u32 %v245, %v247
    %v252 = vadd.s32 %v248, 1
    %v253 = vsel %vm251, %v252, %v248
    %v254 = vadd.s32 %v249, %v253
    %v255 = vadd.s32 %v254, 536870912
    %v256 = vshrl.u32 %v255, 30
    %v257 = vshll.u32 %v256, 30
    %v258 = vsub.s32 %v254, %v257
    %vm259 = vcmp.lt.s32.totalorder %v258, 0
    %v260 = vsub.s32 0, %v258
    %v261 = vsel %vm259, %v260, %v258
    %v262 = vclz %v261
    %v263 = vsub.s32 %v262, 2
    %vm264 = vcmp.gt.s32.totalorder 0, %v263
    %v265 = vsel %vm264, 0, %v263
    %v266 = vsub.s32 32, %v265
    %v267 = vshll.u32 %v258, %v265
    %v268 = vshrl.u32 %v250, %v266
    %v269 = vor.u32 %v267, %v268
    %v270 = vsub.s32 4294967266, %v265
    %v271 = vadd.s32 %v270, 127
    %v272 = vshll.u32 %v271, 23
    %v273 = vor.u32 4788187, %v272
    %v274 = vand.u32 2147483647, %v273
    %v276 = vcvt.s32.f32 %v269
    %v277 = vmul.f32 %v276, %v274
    %v278 = vxor.u32 %v277, 2147483648
    %v279 = vsel %vm196, %v278, %v277
    %v280 = vsub.s32 4, %v256
    %v281 = vsel %vm196, %v280, %v256
    %v282 = vsel %vm195, %v88, %v279
    %v283 = vsel %vm195, 0, %v281
    %v284 = vcosq.f32.pop %v282
    %v285 = vsinq.f32.pop %v282
    %vm286 = vweird.f32 %v88
    %v287 = vadd.s32 %v283, 3
    %v288 = vand.u32 %v287, 3
    %vm289 = vcmp.lt.s32.totalorder %v288, 2
    %vm290 = vcmp.eq.s32.totalorder %v288, 0
    %v291 = vxor.u32 %v285, 2147483648
    %v292 = vsel %vm290, %v284, %v291
    %vm293 = vcmp.eq.s32.totalorder %v288, 2
    %v294 = vxor.u32 %v284, 2147483648
    %v295 = vsel %vm293, %v294, %v285
    %v296 = vsel %vm289, %v292, %v295
    %v297 = vsel %vm286, nan, %v296
    %v298 = vand.u32 2147483647, %v89
    %vm299 = vcmp.le.f32.partialorder %v298, 0.7853982
    %vm300 = vcmp.lt.s32.totalorder %v89, 0
    %v301 = vand.u32 %v89, 2139095040
    %v302 = vshrl.u32 %v301, 23
    %v303 = vsub.s32 %v302, 127
    %v304 = vand.u32 2147483647, %v89
    %v305 = vand.u32 %v304, 8388607
    %v306 = vor.u32 %v305, 8388608
    %v307 = vsub.s32 0, %v306
    %v308 = vadd.s32 %v303, 1
    %vm309 = vcmp.gt.s32.totalorder %v308, 0
    %v310 = vsel %vm309, %v308, 0
    %v311 = vshrl.u32 %v310, 5
    %v312 = vand.u32 %v310, 31
    %v313 = vsub.s32 32, %v312
    %v314 = vshrl.u32 683565275, %v313
    %v315 = vshll.u32 683565275, %v312
    %v316 = vshrl.u32 2475754826, %v313
    %v317 = vor.u32 %v315, %v316
    %v318 = vshll.u32 2475754826, %v312
    %v319 = vshrl.u32 2131351028, %v313
    %v320 = vor.u32 %v318, %v319
    %v321 = vshll.u32 2131351028, %v312
    %v322 = vshrl.u32 2102212464, %v313
    %v323 = vor.u32 %v321, %v322
    %v324 = vshll.u32 2102212464, %v312
    %v325 = vshrl.u32 920167782, %v313
    %v326 = vor.u32 %v324, %v325
    %v327 = vshll.u32 920167782, %v312
    %v328 = vshrl.u32 1326507024, %v313
    %v329 = vor.u32 %v327, %v328
    %vm330 = vcmp.lt.s32.totalorder %v311, 1
    %vm331 = vcmp.lt.s32.totalorder %v311, 2
    %vm332 = vcmp.lt.s32.totalorder %v311, 3
    %vm333 = vcmp.lt.s32.totalorder %v311, 4
    %v334 = vsel %vm330, %v314, %v317
    %v335 = vsel %vm333, %v323, 2102212464
    %v336 = vsel %vm332, %v320, %v335
    %v337 = vsel %vm331, %v334, %v336
    %v338 = vsel %vm330, %v317, %v320
    %v339 = vsel %vm333, %v326, 920167782
    %v340 = vsel %vm332, %v323, %v339
    %v341 = vsel %vm331, %v338, %v340
    %v342 = vsel %vm330, %v320, %v323
    %v343 = vsel %vm333, %v329, 1326507024
    %v344 = vsel %vm332, %v326, %v343
    %v345 = vsel %vm331, %v342, %v344
    %v346 = vshll.u32 %v306, 8
    %v347 = vmul.u32.u64.compose %v346, %v345
    %v348 = vextract.low.u32 %v347
    %v349 = vextract.high.u32 %v347
    %v350 = vmul.u32.u64.compose %v346, %v341
    %v351 = vextract.low.u32 %v350
    %v352 = vextract.high.u32 %v350
    %v353 = vmul.u32 %v346, %v337
    %v354 = vadd.s32 %v349, %v351
    %vm355 = vc.u32 %v349, %v351
    %v356 = vadd.s32 %v352, 1
    %v357 = vsel %vm355, %v356, %v352
    %v358 = vadd.s32 %v353, %v357
    %v359 = vadd.s32 %v358, 536870912
    %v360 = vshrl.u32 %v359, 30
    %v361 = vshll.u32 %v360, 30
    %v362 = vsub.s32 %v358, %v361
    %vm363 = vcmp.lt.s32.totalorder %v362, 0
    %v364 = vsub.s32 0, %v362
    %v365 = vsel %vm363, %v364, %v362
    %v366 = vclz %v365
    %v367 = vsub.s32 %v366, 2
    %vm368 = vcmp.gt.s32.totalorder 0, %v367
    %v369 = vsel %vm368, 0, %v367
    %v370 = vsub.s32 32, %v369
    %v371 = vshll.u32 %v362, %v369
    %v372 = vshrl.u32 %v354, %v370
    %v373 = vor.u32 %v371, %v372
    %v374 = vsub.s32 4294967266, %v369
    %v375 = vadd.s32 %v374, 127
    %v376 = vshll.u32 %v375, 23
    %v377 = vor.u32 4788187, %v376
    %v378 = vand.u32 2147483647, %v377
    %v380 = vcvt.s32.f32 %v373
    %v381 = vmul.f32 %v380, %v378
    %v382 = vxor.u32 %v381, 2147483648
    %v383 = vsel %vm300, %v382, %v381
    %v384 = vsub.s32 4, %v360
    %v385 = vsel %vm300, %v384, %v360
    %v386 = vsel %vm299, %v89, %v383
    %v387 = vsel %vm299, 0, %v385
    %v388 = vcosq.f32.pop %v386
    %v389 = vsinq.f32.pop %v386
    %vm390 = vweird.f32 %v89
    %v391 = vadd.s32 %v387, 3
    %v392 = vand.u32 %v391, 3
    %vm393 = vcmp.lt.s32.totalorder %v392, 2
    %vm394 = vcmp.eq.s32.totalorder %v392, 0
    %v395 = vxor.u32 %v389, 2147483648
    %v396 = vsel %vm394, %v388, %v395
    %vm397 = vcmp.eq.s32.totalorder %v392, 2
    %v398 = vxor.u32 %v388, 2147483648
    %v399 = vsel %vm397, %v398, %v389
    %v400 = vsel %vm393, %v396, %v399
    %v401 = vsel %vm390, nan, %v400
    %v402 = vand.u32 2147483647, %v87
    %vm403 = vcmp.le.f32.partialorder %v402, 0.7853982
    %vm404 = vcmp.lt.s32.totalorder %v87, 0
    %v405 = vand.u32 %v87, 2139095040
    %v406 = vshrl.u32 %v405, 23
    %v407 = vsub.s32 %v406, 127
    %v408 = vand.u32 2147483647, %v87
    %v409 = vand.u32 %v408, 8388607
    %v410 = vor.u32 %v409, 8388608
    %v411 = vsub.s32 0, %v410
    %v412 = vadd.s32 %v407, 1
    %vm413 = vcmp.gt.s32.totalorder %v412, 0
    %v414 = vsel %vm413, %v412, 0
    %v415 = vshrl.u32 %v414, 5
    %v416 = vand.u32 %v414, 31
    %v417 = vsub.s32 32, %v416
    %v418 = vshrl.u32 683565275, %v417
    %v419 = vshll.u32 683565275, %v416
    %v420 = vshrl.u32 2475754826, %v417
    %v421 = vor.u32 %v419, %v420
    %v422 = vshll.u32 2475754826, %v416
    %v423 = vshrl.u32 2131351028, %v417
    %v424 = vor.u32 %v422, %v423
    %v425 = vshll.u32 2131351028, %v416
    %v426 = vshrl.u32 2102212464, %v417
    %v427 = vor.u32 %v425, %v426
    %v428 = vshll.u32 2102212464, %v416
    %v429 = vshrl.u32 920167782, %v417
    %v430 = vor.u32 %v428, %v429
    %v431 = vshll.u32 920167782, %v416
    %v432 = vshrl.u32 1326507024, %v417
    %v433 = vor.u32 %v431, %v432
    %vm434 = vcmp.lt.s32.totalorder %v415, 1
    %vm435 = vcmp.lt.s32.totalorder %v415, 2
    %vm436 = vcmp.lt.s32.totalorder %v415, 3
    %vm437 = vcmp.lt.s32.totalorder %v415, 4
    %v438 = vsel %vm434, %v418, %v421
    %v439 = vsel %vm437, %v427, 2102212464
    %v440 = vsel %vm436, %v424, %v439
    %v441 = vsel %vm435, %v438, %v440
    %v442 = vsel %vm434, %v421, %v424
    %v443 = vsel %vm437, %v430, 920167782
    %v444 = vsel %vm436, %v427, %v443
    %v445 = vsel %vm435, %v442, %v444
    %v446 = vsel %vm434, %v424, %v427
    %v447 = vsel %vm437, %v433, 1326507024
    %v448 = vsel %vm436, %v430, %v447
    %v449 = vsel %vm435, %v446, %v448
    %v450 = vshll.u32 %v410, 8
    %v451 = vmul.u32.u64.compose %v450, %v449
    %v452 = vextract.low.u32 %v451
    %v453 = vextract.high.u32 %v451
    %v454 = vmul.u32.u64.compose %v450, %v445
    %v455 = vextract.low.u32 %v454
    %v456 = vextract.high.u32 %v454
    %v457 = vmul.u32 %v450, %v441
    %v458 = vadd.s32 %v453, %v455
    %vm459 = vc.u32 %v453, %v455
    %v460 = vadd.s32 %v456, 1
    %v461 = vsel %vm459, %v460, %v456
    %v462 = vadd.s32 %v457, %v461
    %v463 = vadd.s32 %v462, 536870912
    %v464 = vshrl.u32 %v463, 30
    %v465 = vshll.u32 %v464, 30
    %v466 = vsub.s32 %v462, %v465
    %vm467 = vcmp.lt.s32.totalorder %v466, 0
    %v468 = vsub.s32 0, %v466
    %v469 = vsel %vm467, %v468, %v466
    %v470 = vclz %v469
    %v471 = vsub.s32 %v470, 2
    %vm472 = vcmp.gt.s32.totalorder 0, %v471
    %v473 = vsel %vm472, 0, %v471
    %v474 = vsub.s32 32, %v473
    %v475 = vshll.u32 %v466, %v473
    %v476 = vshrl.u32 %v458, %v474
    %v477 = vor.u32 %v475, %v476
    %v478 = vsub.s32 4294967266, %v473
    %v479 = vadd.s32 %v478, 127
    %v480 = vshll.u32 %v479, 23
    %v481 = vor.u32 4788187, %v480
    %v482 = vand.u32 2147483647, %v481
    %v484 = vcvt.s32.f32 %v477
    %v485 = vmul.f32 %v484, %v482
    %v486 = vxor.u32 %v485, 2147483648
    %v487 = vsel %vm404, %v486, %v485
    %v488 = vsub.s32 4, %v464
    %v489 = vsel %vm404, %v488, %v464
    %v490 = vsel %vm403, %v87, %v487
    %v491 = vsel %vm403, 0, %v489
    %v492 = vcosq.f32.pop %v490
    %v493 = vsinq.f32.pop %v490
    %vm494 = vweird.f32 %v87
    %v495 = vand.u32 %v491, 3
    %vm496 = vcmp.lt.s32.totalorder %v495, 2
    %vm497 = vcmp.eq.s32.totalorder %v495, 0
    %v498 = vxor.u32 %v493, 2147483648
    %v499 = vsel %vm497, %v492, %v498
    %vm500 = vcmp.eq.s32.totalorder %v495, 2
    %v501 = vxor.u32 %v492, 2147483648
    %v502 = vsel %vm500, %v501, %v493
    %v503 = vsel %vm496, %v499, %v502
    %v504 = vsel %vm494, nan, %v503
    %v505 = vand.u32 2147483647, %v88
    %vm506 = vcmp.le.f32.partialorder %v505, 0.7853982
    %vm507 = vcmp.lt.s32.totalorder %v88, 0
    %v508 = vand.u32 %v88, 2139095040
    %v509 = vshrl.u32 %v508, 23
    %v510 = vsub.s32 %v509, 127
    %v511 = vand.u32 2147483647, %v88
    %v512 = vand.u32 %v511, 8388607
    %v513 = vor.u32 %v512, 8388608
    %v514 = vsub.s32 0, %v513
    %v515 = vadd.s32 %v510, 1
    %vm516 = vcmp.gt.s32.totalorder %v515, 0
    %v517 = vsel %vm516, %v515, 0
    %v518 = vshrl.u32 %v517, 5
    %v519 = vand.u32 %v517, 31
    %v520 = vsub.s32 32, %v519
    %v521 = vshrl.u32 683565275, %v520
    %v522 = vshll.u32 683565275, %v519
    %v523 = vshrl.u32 2475754826, %v520
    %v524 = vor.u32 %v522, %v523
    %v525 = vshll.u32 2475754826, %v519
    %v526 = vshrl.u32 2131351028, %v520
    %v527 = vor.u32 %v525, %v526
    %v528 = vshll.u32 2131351028, %v519
    %v529 = vshrl.u32 2102212464, %v520
    %v530 = vor.u32 %v528, %v529
    %v531 = vshll.u32 2102212464, %v519
    %v532 = vshrl.u32 920167782, %v520
    %v533 = vor.u32 %v531, %v532
    %v534 = vshll.u32 920167782, %v519
    %v535 = vshrl.u32 1326507024, %v520
    %v536 = vor.u32 %v534, %v535
    %vm537 = vcmp.lt.s32.totalorder %v518, 1
    %vm538 = vcmp.lt.s32.totalorder %v518, 2
    %vm539 = vcmp.lt.s32.totalorder %v518, 3
    %vm540 = vcmp.lt.s32.totalorder %v518, 4
    %v541 = vsel %vm537, %v521, %v524
    %v542 = vsel %vm540, %v530, 2102212464
    %v543 = vsel %vm539, %v527, %v542
    %v544 = vsel %vm538, %v541, %v543
    %v545 = vsel %vm537, %v524, %v527
    %v546 = vsel %vm540, %v533, 920167782
    %v547 = vsel %vm539, %v530, %v546
    %v548 = vsel %vm538, %v545, %v547
    %v549 = vsel %vm537, %v527, %v530
    %v550 = vsel %vm540, %v536, 1326507024
    %v551 = vsel %vm539, %v533, %v550
    %v552 = vsel %vm538, %v549, %v551
    %v553 = vshll.u32 %v513, 8
    %v554 = vmul.u32.u64.compose %v553, %v552
    %v555 = vextract.low.u32 %v554
    %v556 = vextract.high.u32 %v554
    %v557 = vmul.u32.u64.compose %v553, %v548
    %v558 = vextract.low.u32 %v557
    %v559 = vextract.high.u32 %v557
    %v560 = vmul.u32 %v553, %v544
    %v561 = vadd.s32 %v556, %v558
    %vm562 = vc.u32 %v556, %v558
    %v563 = vadd.s32 %v559, 1
    %v564 = vsel %vm562, %v563, %v559
    %v565 = vadd.s32 %v560, %v564
    %v566 = vadd.s32 %v565, 536870912
    %v567 = vshrl.u32 %v566, 30
    %v568 = vshll.u32 %v567, 30
    %v569 = vsub.s32 %v565, %v568
    %vm570 = vcmp.lt.s32.totalorder %v569, 0
    %v571 = vsub.s32 0, %v569
    %v572 = vsel %vm570, %v571, %v569
    %v573 = vclz %v572
    %v574 = vsub.s32 %v573, 2
    %vm575 = vcmp.gt.s32.totalorder 0, %v574
    %v576 = vsel %vm575, 0, %v574
    %v577 = vsub.s32 32, %v576
    %v578 = vshll.u32 %v569, %v576
    %v579 = vshrl.u32 %v561, %v577
    %v580 = vor.u32 %v578, %v579
    %v581 = vsub.s32 4294967266, %v576
    %v582 = vadd.s32 %v581, 127
    %v583 = vshll.u32 %v582, 23
    %v584 = vor.u32 4788187, %v583
    %v585 = vand.u32 2147483647, %v584
    %v587 = vcvt.s32.f32 %v580
    %v588 = vmul.f32 %v587, %v585
    %v589 = vxor.u32 %v588, 2147483648
    %v590 = vsel %vm507, %v589, %v588
    %v591 = vsub.s32 4, %v567
    %v592 = vsel %vm507, %v591, %v567
    %v593 = vsel %vm506, %v88, %v590
    %v594 = vsel %vm506, 0, %v592
    %v595 = vcosq.f32.pop %v593
    %v596 = vsinq.f32.pop %v593
    %vm597 = vweird.f32 %v88
    %v598 = vand.u32 %v594, 3
    %vm599 = vcmp.lt.s32.totalorder %v598, 2
    %vm600 = vcmp.eq.s32.totalorder %v598, 0
    %v601 = vxor.u32 %v596, 2147483648
    %v602 = vsel %vm600, %v595, %v601
    %vm603 = vcmp.eq.s32.totalorder %v598, 2
    %v604 = vxor.u32 %v595, 2147483648
    %v605 = vsel %vm603, %v604, %v596
    %v606 = vsel %vm599, %v602, %v605
    %v607 = vsel %vm597, nan, %v606
    %v608 = vand.u32 2147483647, %v89
    %vm609 = vcmp.le.f32.partialorder %v608, 0.7853982
    %vm610 = vcmp.lt.s32.totalorder %v89, 0
    %v611 = vand.u32 %v89, 2139095040
    %v612 = vshrl.u32 %v611, 23
    %v613 = vsub.s32 %v612, 127
    %v614 = vand.u32 2147483647, %v89
    %v615 = vand.u32 %v614, 8388607
    %v616 = vor.u32 %v615, 8388608
    %v617 = vsub.s32 0, %v616
    %v618 = vadd.s32 %v613, 1
    %vm619 = vcmp.gt.s32.totalorder %v618, 0
    %v620 = vsel %vm619, %v618, 0
    %v621 = vshrl.u32 %v620, 5
    %v622 = vand.u32 %v620, 31
    %v623 = vsub.s32 32, %v622
    %v624 = vshrl.u32 683565275, %v623
    %v625 = vshll.u32 683565275, %v622
    %v626 = vshrl.u32 2475754826, %v623
    %v627 = vor.u32 %v625, %v626
    %v628 = vshll.u32 2475754826, %v622
    %v629 = vshrl.u32 2131351028, %v623
    %v630 = vor.u32 %v628, %v629
    %v631 = vshll.u32 2131351028, %v622
    %v632 = vshrl.u32 2102212464, %v623
    %v633 = vor.u32 %v631, %v632
    %v634 = vshll.u32 2102212464, %v622
    %v635 = vshrl.u32 920167782, %v623
    %v636 = vor.u32 %v634, %v635
    %v637 = vshll.u32 920167782, %v622
    %v638 = vshrl.u32 1326507024, %v623
    %v639 = vor.u32 %v637, %v638
    %vm640 = vcmp.lt.s32.totalorder %v621, 1
    %vm641 = vcmp.lt.s32.totalorder %v621, 2
    %vm642 = vcmp.lt.s32.totalorder %v621, 3
    %vm643 = vcmp.lt.s32.totalorder %v621, 4
    %v644 = vsel %vm640, %v624, %v627
    %v645 = vsel %vm643, %v633, 2102212464
    %v646 = vsel %vm642, %v630, %v645
    %v647 = vsel %vm641, %v644, %v646
    %v648 = vsel %vm640, %v627, %v630
    %v649 = vsel %vm643, %v636, 920167782
    %v650 = vsel %vm642, %v633, %v649
    %v651 = vsel %vm641, %v648, %v650
    %v652 = vsel %vm640, %v630, %v633
    %v653 = vsel %vm643, %v639, 1326507024
    %v654 = vsel %vm642, %v636, %v653
    %v655 = vsel %vm641, %v652, %v654
    %v656 = vshll.u32 %v616, 8
    %v657 = vmul.u32.u64.compose %v656, %v655
    %v658 = vextract.low.u32 %v657
    %v659 = vextract.high.u32 %v657
    %v660 = vmul.u32.u64.compose %v656, %v651
    %v661 = vextract.low.u32 %v660
    %v662 = vextract.high.u32 %v660
    %v663 = vmul.u32 %v656, %v647
    %v664 = vadd.s32 %v659, %v661
    %vm665 = vc.u32 %v659, %v661
    %v666 = vadd.s32 %v662, 1
    %v667 = vsel %vm665, %v666, %v662
    %v668 = vadd.s32 %v663, %v667
    %v669 = vadd.s32 %v668, 536870912
    %v670 = vshrl.u32 %v669, 30
    %v671 = vshll.u32 %v670, 30
    %v672 = vsub.s32 %v668, %v671
    %vm673 = vcmp.lt.s32.totalorder %v672, 0
    %v674 = vsub.s32 0, %v672
    %v675 = vsel %vm673, %v674, %v672
    %v676 = vclz %v675
    %v677 = vsub.s32 %v676, 2
    %vm678 = vcmp.gt.s32.totalorder 0, %v677
    %v679 = vsel %vm678, 0, %v677
    %v680 = vsub.s32 32, %v679
    %v681 = vshll.u32 %v672, %v679
    %v682 = vshrl.u32 %v664, %v680
    %v683 = vor.u32 %v681, %v682
    %v684 = vsub.s32 4294967266, %v679
    %v685 = vadd.s32 %v684, 127
    %v686 = vshll.u32 %v685, 23
    %v687 = vor.u32 4788187, %v686
    %v688 = vand.u32 2147483647, %v687
    %v690 = vcvt.s32.f32 %v683
    %v691 = vmul.f32 %v690, %v688
    %v692 = vxor.u32 %v691, 2147483648
    %v693 = vsel %vm610, %v692, %v691
    %v694 = vsub.s32 4, %v670
    %v695 = vsel %vm610, %v694, %v670
    %v696 = vsel %vm609, %v89, %v693
    %v697 = vsel %vm609, 0, %v695
    %v698 = vcosq.f32.pop %v696
    %v699 = vsinq.f32.pop %v696
    %vm700 = vweird.f32 %v89
    %v701 = vand.u32 %v697, 3
    %vm702 = vcmp.lt.s32.totalorder %v701, 2
    %vm703 = vcmp.eq.s32.totalorder %v701, 0
    %v704 = vxor.u32 %v699, 2147483648
    %v705 = vsel %vm703, %v698, %v704
    %vm706 = vcmp.eq.s32.totalorder %v701, 2
    %v707 = vxor.u32 %v698, 2147483648
    %v708 = vsel %vm706, %v707, %v699
    %v709 = vsel %vm702, %v705, %v708
    %v710 = vsel %vm700, nan, %v709
    %s711 = sld [smem:[#allocation7]]
    %v712 = vstv %s711
    %v713 = vmul.f32 %v193, %v712
    %v714 = vmul.f32 %v297, %v712
    %v715 = vmul.f32 %v401, %v712
    %s716 = sld [smem:[#allocation8]]
    %v717 = vstv %s716
    %v718 = vmul.f32 %v504, %v717
    %v719 = vmul.f32 %v607, %v717
    %v720 = vmul.f32 %v710, %v717
    %v721 = vadd.f32 %v713, %v718
    %v722 = vadd.f32 %v714, %v719
    %v723 = vadd.f32 %v715, %v720
    %s724 = sld [smem:[#allocation10]]
    %v725 = vstv %s724
    %v726 = vadd.f32 %v721, %v725
    %v727 = vadd.f32 %v722, %v725
    %v728 = vadd.f32 %v723, %v725
    %v729 = vtanh.pop %v726
    %v730 = vtanh.pop %v727
    %v731 = vtanh.pop %v728
    %s732 = sld [smem:[#allocation11]]
    %v733 = vstv %s732
    %v734 = vmul.f32 %v729, %v733
    %v735 = vmul.f32 %v730, %v733
    %v736 = vmul.f32 %v731, %v733
    %v737 = vadd.f32 %v734, 0.0
    %v738 = vadd.f32 %v735, 0.0
    %v739 = vadd.f32 %v736, 0.0
    %s740 = sld [smem:[#allocation7 + $0x1]]
    %v741 = vstv %s740
    %v742 = vmul.f32 %v193, %v741
    %v743 = vmul.f32 %v297, %v741
    %v744 = vmul.f32 %v401, %v741
    %s745 = sld [smem:[#allocation8 + $0x1]]
    %v746 = vstv %s745
    %v747 = vmul.f32 %v504, %v746
    %v748 = vmul.f32 %v607, %v746
    %v749 = vmul.f32 %v710, %v746
    %v750 = vadd.f32 %v742, %v747
    %v751 = vadd.f32 %v743, %v748
    %v752 = vadd.f32 %v744, %v749
    %s753 = sld [smem:[#allocation10 + $0x1]]
    %v754 = vstv %s753
    %v755 = vadd.f32 %v750, %v754
    %v756 = vadd.f32 %v751, %v754
    %v757 = vadd.f32 %v752, %v754
    %v758 = vtanh.pop %v755
    %v759 = vtanh.pop %v756
    %v760 = vtanh.pop %v757
    %s761 = sld [smem:[#allocation11 + $0x1]]
    %v762 = vstv %s761
    %v763 = vmul.f32 %v758, %v762
    %v764 = vmul.f32 %v759, %v762
    %v765 = vmul.f32 %v760, %v762
    %v766 = vadd.f32 %v737, %v763
    %v767 = vadd.f32 %v738, %v764
    %v768 = vadd.f32 %v739, %v765
    %s769 = sld [smem:[#allocation7 + $0x2]]
    %v770 = vstv %s769
    %v771 = vmul.f32 %v193, %v770
    %v772 = vmul.f32 %v297, %v770
    %v773 = vmul.f32 %v401, %v770
    %s774 = sld [smem:[#allocation8 + $0x2]]
    %v775 = vstv %s774
    %v776 = vmul.f32 %v504, %v775
    %v777 = vmul.f32 %v607, %v775
    %v778 = vmul.f32 %v710, %v775
    %v779 = vadd.f32 %v771, %v776
    %v780 = vadd.f32 %v772, %v777
    %v781 = vadd.f32 %v773, %v778
    %s782 = sld [smem:[#allocation10 + $0x2]]
    %v783 = vstv %s782
    %v784 = vadd.f32 %v779, %v783
    %v785 = vadd.f32 %v780, %v783
    %v786 = vadd.f32 %v781, %v783
    %v787 = vtanh.pop %v784
    %v788 = vtanh.pop %v785
    %v789 = vtanh.pop %v786
    %s790 = sld [smem:[#allocation11 + $0x2]]
    %v791 = vstv %s790
    %v792 = vmul.f32 %v787, %v791
    %v793 = vmul.f32 %v788, %v791
    %v794 = vmul.f32 %v789, %v791
    %v795 = vadd.f32 %v766, %v792
    %v796 = vadd.f32 %v767, %v793
    %v797 = vadd.f32 %v768, %v794
    %s798 = sld [smem:[#allocation7 + $0x3]]
    %v799 = vstv %s798
    %v800 = vmul.f32 %v193, %v799
    %v801 = vmul.f32 %v297, %v799
    %v802 = vmul.f32 %v401, %v799
    %s803 = sld [smem:[#allocation8 + $0x3]]
    %v804 = vstv %s803
    %v805 = vmul.f32 %v504, %v804
    %v806 = vmul.f32 %v607, %v804
    %v807 = vmul.f32 %v710, %v804
    %v808 = vadd.f32 %v800, %v805
    %v809 = vadd.f32 %v801, %v806
    %v810 = vadd.f32 %v802, %v807
    %s811 = sld [smem:[#allocation10 + $0x3]]
    %v812 = vstv %s811
    %v813 = vadd.f32 %v808, %v812
    %v814 = vadd.f32 %v809, %v812
    %v815 = vadd.f32 %v810, %v812
    %v816 = vtanh.pop %v813
    %v817 = vtanh.pop %v814
    %v818 = vtanh.pop %v815
    %s819 = sld [smem:[#allocation11 + $0x3]]
    %v820 = vstv %s819
    %v821 = vmul.f32 %v816, %v820
    %v822 = vmul.f32 %v817, %v820
    %v823 = vmul.f32 %v818, %v820
    %v824 = vadd.f32 %v795, %v821
    %v825 = vadd.f32 %v796, %v822
    %v826 = vadd.f32 %v797, %v823
    %s827 = sld [smem:[#allocation7 + $0x4]]
    %v828 = vstv %s827
    %v829 = vmul.f32 %v193, %v828
    %v830 = vmul.f32 %v297, %v828
    %v831 = vmul.f32 %v401, %v828
    %s832 = sld [smem:[#allocation8 + $0x4]]
    %v833 = vstv %s832
    %v834 = vmul.f32 %v504, %v833
    %v835 = vmul.f32 %v607, %v833
    %v836 = vmul.f32 %v710, %v833
    %v837 = vadd.f32 %v829, %v834
    %v838 = vadd.f32 %v830, %v835
    %v839 = vadd.f32 %v831, %v836
    %s840 = sld [smem:[#allocation10 + $0x4]]
    %v841 = vstv %s840
    %v842 = vadd.f32 %v837, %v841
    %v843 = vadd.f32 %v838, %v841
    %v844 = vadd.f32 %v839, %v841
    %v845 = vtanh.pop %v842
    %v846 = vtanh.pop %v843
    %v847 = vtanh.pop %v844
    %s848 = sld [smem:[#allocation11 + $0x4]]
    %v849 = vstv %s848
    %v850 = vmul.f32 %v845, %v849
    %v851 = vmul.f32 %v846, %v849
    %v852 = vmul.f32 %v847, %v849
    %v853 = vadd.f32 %v824, %v850
    %v854 = vadd.f32 %v825, %v851
    %v855 = vadd.f32 %v826, %v852
    %s856 = sld [smem:[#allocation7 + $0x5]]
    %v857 = vstv %s856
    %v858 = vmul.f32 %v193, %v857
    %v859 = vmul.f32 %v297, %v857
    %v860 = vmul.f32 %v401, %v857
    %s861 = sld [smem:[#allocation8 + $0x5]]
    %v862 = vstv %s861
    %v863 = vmul.f32 %v504, %v862
    %v864 = vmul.f32 %v607, %v862
    %v865 = vmul.f32 %v710, %v862
    %v866 = vadd.f32 %v858, %v863
    %v867 = vadd.f32 %v859, %v864
    %v868 = vadd.f32 %v860, %v865
    %s869 = sld [smem:[#allocation10 + $0x5]]
    %v870 = vstv %s869
    %v871 = vadd.f32 %v866, %v870
    %v872 = vadd.f32 %v867, %v870
    %v873 = vadd.f32 %v868, %v870
    %v874 = vtanh.pop %v871
    %v875 = vtanh.pop %v872
    %v876 = vtanh.pop %v873
    %s877 = sld [smem:[#allocation11 + $0x5]]
    %v878 = vstv %s877
    %v879 = vmul.f32 %v874, %v878
    %v880 = vmul.f32 %v875, %v878
    %v881 = vmul.f32 %v876, %v878
    %v882 = vadd.f32 %v853, %v879
    %v883 = vadd.f32 %v854, %v880
    %v884 = vadd.f32 %v855, %v881
    %s885 = sld [smem:[#allocation7 + $0x6]]
    %v886 = vstv %s885
    %v887 = vmul.f32 %v193, %v886
    %v888 = vmul.f32 %v297, %v886
    %v889 = vmul.f32 %v401, %v886
    %s890 = sld [smem:[#allocation8 + $0x6]]
    %v891 = vstv %s890
    %v892 = vmul.f32 %v504, %v891
    %v893 = vmul.f32 %v607, %v891
    %v894 = vmul.f32 %v710, %v891
    %v895 = vadd.f32 %v887, %v892
    %v896 = vadd.f32 %v888, %v893
    %v897 = vadd.f32 %v889, %v894
    %s898 = sld [smem:[#allocation10 + $0x6]]
    %v899 = vstv %s898
    %v900 = vadd.f32 %v895, %v899
    %v901 = vadd.f32 %v896, %v899
    %v902 = vadd.f32 %v897, %v899
    %v903 = vtanh.pop %v900
    %v904 = vtanh.pop %v901
    %v905 = vtanh.pop %v902
    %s906 = sld [smem:[#allocation11 + $0x6]]
    %v907 = vstv %s906
    %v908 = vmul.f32 %v903, %v907
    %v909 = vmul.f32 %v904, %v907
    %v910 = vmul.f32 %v905, %v907
    %v911 = vadd.f32 %v882, %v908
    %v912 = vadd.f32 %v883, %v909
    %v913 = vadd.f32 %v884, %v910
    %s914 = sld [smem:[#allocation7 + $0x7]]
    %v915 = vstv %s914
    %v916 = vmul.f32 %v193, %v915
    %v917 = vmul.f32 %v297, %v915
    %v918 = vmul.f32 %v401, %v915
    %s919 = sld [smem:[#allocation8 + $0x7]]
    %v920 = vstv %s919
    %v921 = vmul.f32 %v504, %v920
    %v922 = vmul.f32 %v607, %v920
    %v923 = vmul.f32 %v710, %v920
    %v924 = vadd.f32 %v916, %v921
    %v925 = vadd.f32 %v917, %v922
    %v926 = vadd.f32 %v918, %v923
    %s927 = sld [smem:[#allocation10 + $0x7]]
    %v928 = vstv %s927
    %v929 = vadd.f32 %v924, %v928
    %v930 = vadd.f32 %v925, %v928
    %v931 = vadd.f32 %v926, %v928
    %v932 = vtanh.pop %v929
    %v933 = vtanh.pop %v930
    %v934 = vtanh.pop %v931
    %s935 = sld [smem:[#allocation11 + $0x7]]
    %v936 = vstv %s935
    %v937 = vmul.f32 %v932, %v936
    %v938 = vmul.f32 %v933, %v936
    %v939 = vmul.f32 %v934, %v936
    %v940 = vadd.f32 %v911, %v937
    %v941 = vadd.f32 %v912, %v938
    %v942 = vadd.f32 %v913, %v939
    %s943 = sld [smem:[#allocation7 + $0x8]]
    %v944 = vstv %s943
    %v945 = vmul.f32 %v193, %v944
    %v946 = vmul.f32 %v297, %v944
    %v947 = vmul.f32 %v401, %v944
    %s948 = sld [smem:[#allocation8 + $0x8]]
    %v949 = vstv %s948
    %v950 = vmul.f32 %v504, %v949
    %v951 = vmul.f32 %v607, %v949
    %v952 = vmul.f32 %v710, %v949
    %v953 = vadd.f32 %v945, %v950
    %v954 = vadd.f32 %v946, %v951
    %v955 = vadd.f32 %v947, %v952
    %s956 = sld [smem:[#allocation10 + $0x8]]
    %v957 = vstv %s956
    %v958 = vadd.f32 %v953, %v957
    %v959 = vadd.f32 %v954, %v957
    %v960 = vadd.f32 %v955, %v957
    %v961 = vtanh.pop %v958
    %v962 = vtanh.pop %v959
    %v963 = vtanh.pop %v960
    %s964 = sld [smem:[#allocation11 + $0x8]]
    %v965 = vstv %s964
    %v966 = vmul.f32 %v961, %v965
    %v967 = vmul.f32 %v962, %v965
    %v968 = vmul.f32 %v963, %v965
    %v969 = vadd.f32 %v940, %v966
    %v970 = vadd.f32 %v941, %v967
    %v971 = vadd.f32 %v942, %v968
    %s972 = sld [smem:[#allocation7 + $0x9]]
    %v973 = vstv %s972
    %v974 = vmul.f32 %v193, %v973
    %v975 = vmul.f32 %v297, %v973
    %v976 = vmul.f32 %v401, %v973
    %s977 = sld [smem:[#allocation8 + $0x9]]
    %v978 = vstv %s977
    %v979 = vmul.f32 %v504, %v978
    %v980 = vmul.f32 %v607, %v978
    %v981 = vmul.f32 %v710, %v978
    %v982 = vadd.f32 %v974, %v979
    %v983 = vadd.f32 %v975, %v980
    %v984 = vadd.f32 %v976, %v981
    %s985 = sld [smem:[#allocation10 + $0x9]]
    %v986 = vstv %s985
    %v987 = vadd.f32 %v982, %v986
    %v988 = vadd.f32 %v983, %v986
    %v989 = vadd.f32 %v984, %v986
    %v990 = vtanh.pop %v987
    %v991 = vtanh.pop %v988
    %v992 = vtanh.pop %v989
    %s993 = sld [smem:[#allocation11 + $0x9]]
    %v994 = vstv %s993
    %v995 = vmul.f32 %v990, %v994
    %v996 = vmul.f32 %v991, %v994
    %v997 = vmul.f32 %v992, %v994
    %v998 = vadd.f32 %v969, %v995
    %v999 = vadd.f32 %v970, %v996
    %v1000 = vadd.f32 %v971, %v997
    %s1001 = sld [smem:[#allocation7 + $0xa]]
    %v1002 = vstv %s1001
    %v1003 = vmul.f32 %v193, %v1002
    %v1004 = vmul.f32 %v297, %v1002
    %v1005 = vmul.f32 %v401, %v1002
    %s1006 = sld [smem:[#allocation8 + $0xa]]
    %v1007 = vstv %s1006
    %v1008 = vmul.f32 %v504, %v1007
    %v1009 = vmul.f32 %v607, %v1007
    %v1010 = vmul.f32 %v710, %v1007
    %v1011 = vadd.f32 %v1003, %v1008
    %v1012 = vadd.f32 %v1004, %v1009
    %v1013 = vadd.f32 %v1005, %v1010
    %s1014 = sld [smem:[#allocation10 + $0xa]]
    %v1015 = vstv %s1014
    %v1016 = vadd.f32 %v1011, %v1015
    %v1017 = vadd.f32 %v1012, %v1015
    %v1018 = vadd.f32 %v1013, %v1015
    %v1019 = vtanh.pop %v1016
    %v1020 = vtanh.pop %v1017
    %v1021 = vtanh.pop %v1018
    %s1022 = sld [smem:[#allocation11 + $0xa]]
    %v1023 = vstv %s1022
    %v1024 = vmul.f32 %v1019, %v1023
    %v1025 = vmul.f32 %v1020, %v1023
    %v1026 = vmul.f32 %v1021, %v1023
    %v1027 = vadd.f32 %v998, %v1024
    %v1028 = vadd.f32 %v999, %v1025
    %v1029 = vadd.f32 %v1000, %v1026
    %s1030 = sld [smem:[#allocation7 + $0xb]]
    %v1031 = vstv %s1030
    %v1032 = vmul.f32 %v193, %v1031
    %v1033 = vmul.f32 %v297, %v1031
    %v1034 = vmul.f32 %v401, %v1031
    %s1035 = sld [smem:[#allocation8 + $0xb]]
    %v1036 = vstv %s1035
    %v1037 = vmul.f32 %v504, %v1036
    %v1038 = vmul.f32 %v607, %v1036
    %v1039 = vmul.f32 %v710, %v1036
    %v1040 = vadd.f32 %v1032, %v1037
    %v1041 = vadd.f32 %v1033, %v1038
    %v1042 = vadd.f32 %v1034, %v1039
    %s1043 = sld [smem:[#allocation10 + $0xb]]
    %v1044 = vstv %s1043
    %v1045 = vadd.f32 %v1040, %v1044
    %v1046 = vadd.f32 %v1041, %v1044
    %v1047 = vadd.f32 %v1042, %v1044
    %v1048 = vtanh.pop %v1045
    %v1049 = vtanh.pop %v1046
    %v1050 = vtanh.pop %v1047
    %s1051 = sld [smem:[#allocation11 + $0xb]]
    %v1052 = vstv %s1051
    %v1053 = vmul.f32 %v1048, %v1052
    %v1054 = vmul.f32 %v1049, %v1052
    %v1055 = vmul.f32 %v1050, %v1052
    %v1056 = vadd.f32 %v1027, %v1053
    %v1057 = vadd.f32 %v1028, %v1054
    %v1058 = vadd.f32 %v1029, %v1055
    %s1059 = sld [smem:[#allocation7 + $0xc]]
    %v1060 = vstv %s1059
    %v1061 = vmul.f32 %v193, %v1060
    %v1062 = vmul.f32 %v297, %v1060
    %v1063 = vmul.f32 %v401, %v1060
    %s1064 = sld [smem:[#allocation8 + $0xc]]
    %v1065 = vstv %s1064
    %v1066 = vmul.f32 %v504, %v1065
    %v1067 = vmul.f32 %v607, %v1065
    %v1068 = vmul.f32 %v710, %v1065
    %v1069 = vadd.f32 %v1061, %v1066
    %v1070 = vadd.f32 %v1062, %v1067
    %v1071 = vadd.f32 %v1063, %v1068
    %s1072 = sld [smem:[#allocation10 + $0xc]]
    %v1073 = vstv %s1072
    %v1074 = vadd.f32 %v1069, %v1073
    %v1075 = vadd.f32 %v1070, %v1073
    %v1076 = vadd.f32 %v1071, %v1073
    %v1077 = vtanh.pop %v1074
    %v1078 = vtanh.pop %v1075
    %v1079 = vtanh.pop %v1076
    %s1080 = sld [smem:[#allocation11 + $0xc]]
    %v1081 = vstv %s1080
    %v1082 = vmul.f32 %v1077, %v1081
    %v1083 = vmul.f32 %v1078, %v1081
    %v1084 = vmul.f32 %v1079, %v1081
    %v1085 = vadd.f32 %v1056, %v1082
    %v1086 = vadd.f32 %v1057, %v1083
    %v1087 = vadd.f32 %v1058, %v1084
    %s1088 = sld [smem:[#allocation7 + $0xd]]
    %v1089 = vstv %s1088
    %v1090 = vmul.f32 %v193, %v1089
    %v1091 = vmul.f32 %v297, %v1089
    %v1092 = vmul.f32 %v401, %v1089
    %s1093 = sld [smem:[#allocation8 + $0xd]]
    %v1094 = vstv %s1093
    %v1095 = vmul.f32 %v504, %v1094
    %v1096 = vmul.f32 %v607, %v1094
    %v1097 = vmul.f32 %v710, %v1094
    %v1098 = vadd.f32 %v1090, %v1095
    %v1099 = vadd.f32 %v1091, %v1096
    %v1100 = vadd.f32 %v1092, %v1097
    %s1101 = sld [smem:[#allocation10 + $0xd]]
    %v1102 = vstv %s1101
    %v1103 = vadd.f32 %v1098, %v1102
    %v1104 = vadd.f32 %v1099, %v1102
    %v1105 = vadd.f32 %v1100, %v1102
    %v1106 = vtanh.pop %v1103
    %v1107 = vtanh.pop %v1104
    %v1108 = vtanh.pop %v1105
    %s1109 = sld [smem:[#allocation11 + $0xd]]
    %v1110 = vstv %s1109
    %v1111 = vmul.f32 %v1106, %v1110
    %v1112 = vmul.f32 %v1107, %v1110
    %v1113 = vmul.f32 %v1108, %v1110
    %v1114 = vadd.f32 %v1085, %v1111
    %v1115 = vadd.f32 %v1086, %v1112
    %v1116 = vadd.f32 %v1087, %v1113
    %s1117 = sld [smem:[#allocation7 + $0xe]]
    %v1118 = vstv %s1117
    %v1119 = vmul.f32 %v193, %v1118
    %v1120 = vmul.f32 %v297, %v1118
    %v1121 = vmul.f32 %v401, %v1118
    %s1122 = sld [smem:[#allocation8 + $0xe]]
    %v1123 = vstv %s1122
    %v1124 = vmul.f32 %v504, %v1123
    %v1125 = vmul.f32 %v607, %v1123
    %v1126 = vmul.f32 %v710, %v1123
    %v1127 = vadd.f32 %v1119, %v1124
    %v1128 = vadd.f32 %v1120, %v1125
    %v1129 = vadd.f32 %v1121, %v1126
    %s1130 = sld [smem:[#allocation10 + $0xe]]
    %v1131 = vstv %s1130
    %v1132 = vadd.f32 %v1127, %v1131
    %v1133 = vadd.f32 %v1128, %v1131
    %v1134 = vadd.f32 %v1129, %v1131
    %v1135 = vtanh.pop %v1132
    %v1136 = vtanh.pop %v1133
    %v1137 = vtanh.pop %v1134
    %s1138 = sld [smem:[#allocation11 + $0xe]]
    %v1139 = vstv %s1138
    %v1140 = vmul.f32 %v1135, %v1139
    %v1141 = vmul.f32 %v1136, %v1139
    %v1142 = vmul.f32 %v1137, %v1139
    %v1143 = vadd.f32 %v1114, %v1140
    %v1144 = vadd.f32 %v1115, %v1141
    %v1145 = vadd.f32 %v1116, %v1142
    %s1146 = sld [smem:[#allocation7 + $0xf]]
    %v1147 = vstv %s1146
    %v1148 = vmul.f32 %v193, %v1147
    %v1149 = vmul.f32 %v297, %v1147
    %v1150 = vmul.f32 %v401, %v1147
    %s1151 = sld [smem:[#allocation8 + $0xf]]
    %v1152 = vstv %s1151
    %v1153 = vmul.f32 %v504, %v1152
    %v1154 = vmul.f32 %v607, %v1152
    %v1155 = vmul.f32 %v710, %v1152
    %v1156 = vadd.f32 %v1148, %v1153
    %v1157 = vadd.f32 %v1149, %v1154
    %v1158 = vadd.f32 %v1150, %v1155
    %s1159 = sld [smem:[#allocation10 + $0xf]]
    %v1160 = vstv %s1159
    %v1161 = vadd.f32 %v1156, %v1160
    %v1162 = vadd.f32 %v1157, %v1160
    %v1163 = vadd.f32 %v1158, %v1160
    %v1164 = vtanh.pop %v1161
    %v1165 = vtanh.pop %v1162
    %v1166 = vtanh.pop %v1163
    %s1167 = sld [smem:[#allocation11 + $0xf]]
    %v1168 = vstv %s1167
    %v1169 = vmul.f32 %v1164, %v1168
    %v1170 = vmul.f32 %v1165, %v1168
    %v1171 = vmul.f32 %v1166, %v1168
    %v1172 = vadd.f32 %v1143, %v1169
    %v1173 = vadd.f32 %v1144, %v1170
    %v1174 = vadd.f32 %v1145, %v1171
    %s1175 = sld [smem:[#allocation7 + $0x10]]
    %v1176 = vstv %s1175
    %v1177 = vmul.f32 %v193, %v1176
    %v1178 = vmul.f32 %v297, %v1176
    %v1179 = vmul.f32 %v401, %v1176
    %s1180 = sld [smem:[#allocation8 + $0x10]]
    %v1181 = vstv %s1180
    %v1182 = vmul.f32 %v504, %v1181
    %v1183 = vmul.f32 %v607, %v1181
    %v1184 = vmul.f32 %v710, %v1181
    %v1185 = vadd.f32 %v1177, %v1182
    %v1186 = vadd.f32 %v1178, %v1183
    %v1187 = vadd.f32 %v1179, %v1184
    %s1188 = sld [smem:[#allocation10 + $0x10]]
    %v1189 = vstv %s1188
    %v1190 = vadd.f32 %v1185, %v1189
    %v1191 = vadd.f32 %v1186, %v1189
    %v1192 = vadd.f32 %v1187, %v1189
    %v1193 = vtanh.pop %v1190
    %v1194 = vtanh.pop %v1191
    %v1195 = vtanh.pop %v1192
    %s1196 = sld [smem:[#allocation11 + $0x10]]
    %v1197 = vstv %s1196
    %v1198 = vmul.f32 %v1193, %v1197
    %v1199 = vmul.f32 %v1194, %v1197
    %v1200 = vmul.f32 %v1195, %v1197
    %v1201 = vadd.f32 %v1172, %v1198
    %v1202 = vadd.f32 %v1173, %v1199
    %v1203 = vadd.f32 %v1174, %v1200
    %s1204 = sld [smem:[#allocation7 + $0x11]]
    %v1205 = vstv %s1204
    %v1206 = vmul.f32 %v193, %v1205
    %v1207 = vmul.f32 %v297, %v1205
    %v1208 = vmul.f32 %v401, %v1205
    %s1209 = sld [smem:[#allocation8 + $0x11]]
    %v1210 = vstv %s1209
    %v1211 = vmul.f32 %v504, %v1210
    %v1212 = vmul.f32 %v607, %v1210
    %v1213 = vmul.f32 %v710, %v1210
    %v1214 = vadd.f32 %v1206, %v1211
    %v1215 = vadd.f32 %v1207, %v1212
    %v1216 = vadd.f32 %v1208, %v1213
    %s1217 = sld [smem:[#allocation10 + $0x11]]
    %v1218 = vstv %s1217
    %v1219 = vadd.f32 %v1214, %v1218
    %v1220 = vadd.f32 %v1215, %v1218
    %v1221 = vadd.f32 %v1216, %v1218
    %v1222 = vtanh.pop %v1219
    %v1223 = vtanh.pop %v1220
    %v1224 = vtanh.pop %v1221
    %s1225 = sld [smem:[#allocation11 + $0x11]]
    %v1226 = vstv %s1225
    %v1227 = vmul.f32 %v1222, %v1226
    %v1228 = vmul.f32 %v1223, %v1226
    %v1229 = vmul.f32 %v1224, %v1226
    %v1230 = vadd.f32 %v1201, %v1227
    %v1231 = vadd.f32 %v1202, %v1228
    %v1232 = vadd.f32 %v1203, %v1229
    %s1233 = sld [smem:[#allocation7 + $0x12]]
    %v1234 = vstv %s1233
    %v1235 = vmul.f32 %v193, %v1234
    %v1236 = vmul.f32 %v297, %v1234
    %v1237 = vmul.f32 %v401, %v1234
    %s1238 = sld [smem:[#allocation8 + $0x12]]
    %v1239 = vstv %s1238
    %v1240 = vmul.f32 %v504, %v1239
    %v1241 = vmul.f32 %v607, %v1239
    %v1242 = vmul.f32 %v710, %v1239
    %v1243 = vadd.f32 %v1235, %v1240
    %v1244 = vadd.f32 %v1236, %v1241
    %v1245 = vadd.f32 %v1237, %v1242
    %s1246 = sld [smem:[#allocation10 + $0x12]]
    %v1247 = vstv %s1246
    %v1248 = vadd.f32 %v1243, %v1247
    %v1249 = vadd.f32 %v1244, %v1247
    %v1250 = vadd.f32 %v1245, %v1247
    %v1251 = vtanh.pop %v1248
    %v1252 = vtanh.pop %v1249
    %v1253 = vtanh.pop %v1250
    %s1254 = sld [smem:[#allocation11 + $0x12]]
    %v1255 = vstv %s1254
    %v1256 = vmul.f32 %v1251, %v1255
    %v1257 = vmul.f32 %v1252, %v1255
    %v1258 = vmul.f32 %v1253, %v1255
    %v1259 = vadd.f32 %v1230, %v1256
    %v1260 = vadd.f32 %v1231, %v1257
    %v1261 = vadd.f32 %v1232, %v1258
    %s1262 = sld [smem:[#allocation7 + $0x13]]
    %v1263 = vstv %s1262
    %v1264 = vmul.f32 %v193, %v1263
    %v1265 = vmul.f32 %v297, %v1263
    %v1266 = vmul.f32 %v401, %v1263
    %s1267 = sld [smem:[#allocation8 + $0x13]]
    %v1268 = vstv %s1267
    %v1269 = vmul.f32 %v504, %v1268
    %v1270 = vmul.f32 %v607, %v1268
    %v1271 = vmul.f32 %v710, %v1268
    %v1272 = vadd.f32 %v1264, %v1269
    %v1273 = vadd.f32 %v1265, %v1270
    %v1274 = vadd.f32 %v1266, %v1271
    %s1275 = sld [smem:[#allocation10 + $0x13]]
    %v1276 = vstv %s1275
    %v1277 = vadd.f32 %v1272, %v1276
    %v1278 = vadd.f32 %v1273, %v1276
    %v1279 = vadd.f32 %v1274, %v1276
    %v1280 = vtanh.pop %v1277
    %v1281 = vtanh.pop %v1278
    %v1282 = vtanh.pop %v1279
    %s1283 = sld [smem:[#allocation11 + $0x13]]
    %v1284 = vstv %s1283
    %v1285 = vmul.f32 %v1280, %v1284
    %v1286 = vmul.f32 %v1281, %v1284
    %v1287 = vmul.f32 %v1282, %v1284
    %v1288 = vadd.f32 %v1259, %v1285
    %v1289 = vadd.f32 %v1260, %v1286
    %v1290 = vadd.f32 %v1261, %v1287
    %s1291 = sld [smem:[#allocation7 + $0x14]]
    %v1292 = vstv %s1291
    %v1293 = vmul.f32 %v193, %v1292
    %v1294 = vmul.f32 %v297, %v1292
    %v1295 = vmul.f32 %v401, %v1292
    %s1296 = sld [smem:[#allocation8 + $0x14]]
    %v1297 = vstv %s1296
    %v1298 = vmul.f32 %v504, %v1297
    %v1299 = vmul.f32 %v607, %v1297
    %v1300 = vmul.f32 %v710, %v1297
    %v1301 = vadd.f32 %v1293, %v1298
    %v1302 = vadd.f32 %v1294, %v1299
    %v1303 = vadd.f32 %v1295, %v1300
    %s1304 = sld [smem:[#allocation10 + $0x14]]
    %v1305 = vstv %s1304
    %v1306 = vadd.f32 %v1301, %v1305
    %v1307 = vadd.f32 %v1302, %v1305
    %v1308 = vadd.f32 %v1303, %v1305
    %v1309 = vtanh.pop %v1306
    %v1310 = vtanh.pop %v1307
    %v1311 = vtanh.pop %v1308
    %s1312 = sld [smem:[#allocation11 + $0x14]]
    %v1313 = vstv %s1312
    %v1314 = vmul.f32 %v1309, %v1313
    %v1315 = vmul.f32 %v1310, %v1313
    %v1316 = vmul.f32 %v1311, %v1313
    %v1317 = vadd.f32 %v1288, %v1314
    %v1318 = vadd.f32 %v1289, %v1315
    %v1319 = vadd.f32 %v1290, %v1316
    %s1320 = sld [smem:[#allocation7 + $0x15]]
    %v1321 = vstv %s1320
    %v1322 = vmul.f32 %v193, %v1321
    %v1323 = vmul.f32 %v297, %v1321
    %v1324 = vmul.f32 %v401, %v1321
    %s1325 = sld [smem:[#allocation8 + $0x15]]
    %v1326 = vstv %s1325
    %v1327 = vmul.f32 %v504, %v1326
    %v1328 = vmul.f32 %v607, %v1326
    %v1329 = vmul.f32 %v710, %v1326
    %v1330 = vadd.f32 %v1322, %v1327
    %v1331 = vadd.f32 %v1323, %v1328
    %v1332 = vadd.f32 %v1324, %v1329
    %s1333 = sld [smem:[#allocation10 + $0x15]]
    %v1334 = vstv %s1333
    %v1335 = vadd.f32 %v1330, %v1334
    %v1336 = vadd.f32 %v1331, %v1334
    %v1337 = vadd.f32 %v1332, %v1334
    %v1338 = vtanh.pop %v1335
    %v1339 = vtanh.pop %v1336
    %v1340 = vtanh.pop %v1337
    %s1341 = sld [smem:[#allocation11 + $0x15]]
    %v1342 = vstv %s1341
    %v1343 = vmul.f32 %v1338, %v1342
    %v1344 = vmul.f32 %v1339, %v1342
    %v1345 = vmul.f32 %v1340, %v1342
    %v1346 = vadd.f32 %v1317, %v1343
    %v1347 = vadd.f32 %v1318, %v1344
    %v1348 = vadd.f32 %v1319, %v1345
    %s1349 = sld [smem:[#allocation7 + $0x16]]
    %v1350 = vstv %s1349
    %v1351 = vmul.f32 %v193, %v1350
    %v1352 = vmul.f32 %v297, %v1350
    %v1353 = vmul.f32 %v401, %v1350
    %s1354 = sld [smem:[#allocation8 + $0x16]]
    %v1355 = vstv %s1354
    %v1356 = vmul.f32 %v504, %v1355
    %v1357 = vmul.f32 %v607, %v1355
    %v1358 = vmul.f32 %v710, %v1355
    %v1359 = vadd.f32 %v1351, %v1356
    %v1360 = vadd.f32 %v1352, %v1357
    %v1361 = vadd.f32 %v1353, %v1358
    %s1362 = sld [smem:[#allocation10 + $0x16]]
    %v1363 = vstv %s1362
    %v1364 = vadd.f32 %v1359, %v1363
    %v1365 = vadd.f32 %v1360, %v1363
    %v1366 = vadd.f32 %v1361, %v1363
    %v1367 = vtanh.pop %v1364
    %v1368 = vtanh.pop %v1365
    %v1369 = vtanh.pop %v1366
    %s1370 = sld [smem:[#allocation11 + $0x16]]
    %v1371 = vstv %s1370
    %v1372 = vmul.f32 %v1367, %v1371
    %v1373 = vmul.f32 %v1368, %v1371
    %v1374 = vmul.f32 %v1369, %v1371
    %v1375 = vadd.f32 %v1346, %v1372
    %v1376 = vadd.f32 %v1347, %v1373
    %v1377 = vadd.f32 %v1348, %v1374
    %s1378 = sld [smem:[#allocation7 + $0x17]]
    %v1379 = vstv %s1378
    %v1380 = vmul.f32 %v193, %v1379
    %v1381 = vmul.f32 %v297, %v1379
    %v1382 = vmul.f32 %v401, %v1379
    %s1383 = sld [smem:[#allocation8 + $0x17]]
    %v1384 = vstv %s1383
    %v1385 = vmul.f32 %v504, %v1384
    %v1386 = vmul.f32 %v607, %v1384
    %v1387 = vmul.f32 %v710, %v1384
    %v1388 = vadd.f32 %v1380, %v1385
    %v1389 = vadd.f32 %v1381, %v1386
    %v1390 = vadd.f32 %v1382, %v1387
    %s1391 = sld [smem:[#allocation10 + $0x17]]
    %v1392 = vstv %s1391
    %v1393 = vadd.f32 %v1388, %v1392
    %v1394 = vadd.f32 %v1389, %v1392
    %v1395 = vadd.f32 %v1390, %v1392
    %v1396 = vtanh.pop %v1393
    %v1397 = vtanh.pop %v1394
    %v1398 = vtanh.pop %v1395
    %s1399 = sld [smem:[#allocation11 + $0x17]]
    %v1400 = vstv %s1399
    %v1401 = vmul.f32 %v1396, %v1400
    %v1402 = vmul.f32 %v1397, %v1400
    %v1403 = vmul.f32 %v1398, %v1400
    %v1404 = vadd.f32 %v1375, %v1401
    %v1405 = vadd.f32 %v1376, %v1402
    %v1406 = vadd.f32 %v1377, %v1403
    %s1407 = sld [smem:[#allocation7 + $0x18]]
    %v1408 = vstv %s1407
    %v1409 = vmul.f32 %v193, %v1408
    %v1410 = vmul.f32 %v297, %v1408
    %v1411 = vmul.f32 %v401, %v1408
    %s1412 = sld [smem:[#allocation8 + $0x18]]
    %v1413 = vstv %s1412
    %v1414 = vmul.f32 %v504, %v1413
    %v1415 = vmul.f32 %v607, %v1413
    %v1416 = vmul.f32 %v710, %v1413
    %v1417 = vadd.f32 %v1409, %v1414
    %v1418 = vadd.f32 %v1410, %v1415
    %v1419 = vadd.f32 %v1411, %v1416
    %s1420 = sld [smem:[#allocation10 + $0x18]]
    %v1421 = vstv %s1420
    %v1422 = vadd.f32 %v1417, %v1421
    %v1423 = vadd.f32 %v1418, %v1421
    %v1424 = vadd.f32 %v1419, %v1421
    %v1425 = vtanh.pop %v1422
    %v1426 = vtanh.pop %v1423
    %v1427 = vtanh.pop %v1424
    %s1428 = sld [smem:[#allocation11 + $0x18]]
    %v1429 = vstv %s1428
    %v1430 = vmul.f32 %v1425, %v1429
    %v1431 = vmul.f32 %v1426, %v1429
    %v1432 = vmul.f32 %v1427, %v1429
    %v1433 = vadd.f32 %v1404, %v1430
    %v1434 = vadd.f32 %v1405, %v1431
    %v1435 = vadd.f32 %v1406, %v1432
    %s1436 = sld [smem:[#allocation7 + $0x19]]
    %v1437 = vstv %s1436
    %v1438 = vmul.f32 %v193, %v1437
    %v1439 = vmul.f32 %v297, %v1437
    %v1440 = vmul.f32 %v401, %v1437
    %s1441 = sld [smem:[#allocation8 + $0x19]]
    %v1442 = vstv %s1441
    %v1443 = vmul.f32 %v504, %v1442
    %v1444 = vmul.f32 %v607, %v1442
    %v1445 = vmul.f32 %v710, %v1442
    %v1446 = vadd.f32 %v1438, %v1443
    %v1447 = vadd.f32 %v1439, %v1444
    %v1448 = vadd.f32 %v1440, %v1445
    %s1449 = sld [smem:[#allocation10 + $0x19]]
    %v1450 = vstv %s1449
    %v1451 = vadd.f32 %v1446, %v1450
    %v1452 = vadd.f32 %v1447, %v1450
    %v1453 = vadd.f32 %v1448, %v1450
    %v1454 = vtanh.pop %v1451
    %v1455 = vtanh.pop %v1452
    %v1456 = vtanh.pop %v1453
    %s1457 = sld [smem:[#allocation11 + $0x19]]
    %v1458 = vstv %s1457
    %v1459 = vmul.f32 %v1454, %v1458
    %v1460 = vmul.f32 %v1455, %v1458
    %v1461 = vmul.f32 %v1456, %v1458
    %v1462 = vadd.f32 %v1433, %v1459
    %v1463 = vadd.f32 %v1434, %v1460
    %v1464 = vadd.f32 %v1435, %v1461
    %s1465 = sld [smem:[#allocation7 + $0x1a]]
    %v1466 = vstv %s1465
    %v1467 = vmul.f32 %v193, %v1466
    %v1468 = vmul.f32 %v297, %v1466
    %v1469 = vmul.f32 %v401, %v1466
    %s1470 = sld [smem:[#allocation8 + $0x1a]]
    %v1471 = vstv %s1470
    %v1472 = vmul.f32 %v504, %v1471
    %v1473 = vmul.f32 %v607, %v1471
    %v1474 = vmul.f32 %v710, %v1471
    %v1475 = vadd.f32 %v1467, %v1472
    %v1476 = vadd.f32 %v1468, %v1473
    %v1477 = vadd.f32 %v1469, %v1474
    %s1478 = sld [smem:[#allocation10 + $0x1a]]
    %v1479 = vstv %s1478
    %v1480 = vadd.f32 %v1475, %v1479
    %v1481 = vadd.f32 %v1476, %v1479
    %v1482 = vadd.f32 %v1477, %v1479
    %v1483 = vtanh.pop %v1480
    %v1484 = vtanh.pop %v1481
    %v1485 = vtanh.pop %v1482
    %s1486 = sld [smem:[#allocation11 + $0x1a]]
    %v1487 = vstv %s1486
    %v1488 = vmul.f32 %v1483, %v1487
    %v1489 = vmul.f32 %v1484, %v1487
    %v1490 = vmul.f32 %v1485, %v1487
    %v1491 = vadd.f32 %v1462, %v1488
    %v1492 = vadd.f32 %v1463, %v1489
    %v1493 = vadd.f32 %v1464, %v1490
    %s1494 = sld [smem:[#allocation7 + $0x1b]]
    %v1495 = vstv %s1494
    %v1496 = vmul.f32 %v193, %v1495
    %v1497 = vmul.f32 %v297, %v1495
    %v1498 = vmul.f32 %v401, %v1495
    %s1499 = sld [smem:[#allocation8 + $0x1b]]
    %v1500 = vstv %s1499
    %v1501 = vmul.f32 %v504, %v1500
    %v1502 = vmul.f32 %v607, %v1500
    %v1503 = vmul.f32 %v710, %v1500
    %v1504 = vadd.f32 %v1496, %v1501
    %v1505 = vadd.f32 %v1497, %v1502
    %v1506 = vadd.f32 %v1498, %v1503
    %s1507 = sld [smem:[#allocation10 + $0x1b]]
    %v1508 = vstv %s1507
    %v1509 = vadd.f32 %v1504, %v1508
    %v1510 = vadd.f32 %v1505, %v1508
    %v1511 = vadd.f32 %v1506, %v1508
    %v1512 = vtanh.pop %v1509
    %v1513 = vtanh.pop %v1510
    %v1514 = vtanh.pop %v1511
    %s1515 = sld [smem:[#allocation11 + $0x1b]]
    %v1516 = vstv %s1515
    %v1517 = vmul.f32 %v1512, %v1516
    %v1518 = vmul.f32 %v1513, %v1516
    %v1519 = vmul.f32 %v1514, %v1516
    %v1520 = vadd.f32 %v1491, %v1517
    %v1521 = vadd.f32 %v1492, %v1518
    %v1522 = vadd.f32 %v1493, %v1519
    %s1523 = sld [smem:[#allocation7 + $0x1c]]
    %v1524 = vstv %s1523
    %v1525 = vmul.f32 %v193, %v1524
    %v1526 = vmul.f32 %v297, %v1524
    %v1527 = vmul.f32 %v401, %v1524
    %s1528 = sld [smem:[#allocation8 + $0x1c]]
    %v1529 = vstv %s1528
    %v1530 = vmul.f32 %v504, %v1529
    %v1531 = vmul.f32 %v607, %v1529
    %v1532 = vmul.f32 %v710, %v1529
    %v1533 = vadd.f32 %v1525, %v1530
    %v1534 = vadd.f32 %v1526, %v1531
    %v1535 = vadd.f32 %v1527, %v1532
    %s1536 = sld [smem:[#allocation10 + $0x1c]]
    %v1537 = vstv %s1536
    %v1538 = vadd.f32 %v1533, %v1537
    %v1539 = vadd.f32 %v1534, %v1537
    %v1540 = vadd.f32 %v1535, %v1537
    %v1541 = vtanh.pop %v1538
    %v1542 = vtanh.pop %v1539
    %v1543 = vtanh.pop %v1540
    %s1544 = sld [smem:[#allocation11 + $0x1c]]
    %v1545 = vstv %s1544
    %v1546 = vmul.f32 %v1541, %v1545
    %v1547 = vmul.f32 %v1542, %v1545
    %v1548 = vmul.f32 %v1543, %v1545
    %v1549 = vadd.f32 %v1520, %v1546
    %v1550 = vadd.f32 %v1521, %v1547
    %v1551 = vadd.f32 %v1522, %v1548
    %s1552 = sld [smem:[#allocation7 + $0x1d]]
    %v1553 = vstv %s1552
    %v1554 = vmul.f32 %v193, %v1553
    %v1555 = vmul.f32 %v297, %v1553
    %v1556 = vmul.f32 %v401, %v1553
    %s1557 = sld [smem:[#allocation8 + $0x1d]]
    %v1558 = vstv %s1557
    %v1559 = vmul.f32 %v504, %v1558
    %v1560 = vmul.f32 %v607, %v1558
    %v1561 = vmul.f32 %v710, %v1558
    %v1562 = vadd.f32 %v1554, %v1559
    %v1563 = vadd.f32 %v1555, %v1560
    %v1564 = vadd.f32 %v1556, %v1561
    %s1565 = sld [smem:[#allocation10 + $0x1d]]
    %v1566 = vstv %s1565
    %v1567 = vadd.f32 %v1562, %v1566
    %v1568 = vadd.f32 %v1563, %v1566
    %v1569 = vadd.f32 %v1564, %v1566
    %v1570 = vtanh.pop %v1567
    %v1571 = vtanh.pop %v1568
    %v1572 = vtanh.pop %v1569
    %s1573 = sld [smem:[#allocation11 + $0x1d]]
    %v1574 = vstv %s1573
    %v1575 = vmul.f32 %v1570, %v1574
    %v1576 = vmul.f32 %v1571, %v1574
    %v1577 = vmul.f32 %v1572, %v1574
    %v1578 = vadd.f32 %v1549, %v1575
    %v1579 = vadd.f32 %v1550, %v1576
    %v1580 = vadd.f32 %v1551, %v1577
    %s1581 = sld [smem:[#allocation7 + $0x1e]]
    %v1582 = vstv %s1581
    %v1583 = vmul.f32 %v193, %v1582
    %v1584 = vmul.f32 %v297, %v1582
    %v1585 = vmul.f32 %v401, %v1582
    %s1586 = sld [smem:[#allocation8 + $0x1e]]
    %v1587 = vstv %s1586
    %v1588 = vmul.f32 %v504, %v1587
    %v1589 = vmul.f32 %v607, %v1587
    %v1590 = vmul.f32 %v710, %v1587
    %v1591 = vadd.f32 %v1583, %v1588
    %v1592 = vadd.f32 %v1584, %v1589
    %v1593 = vadd.f32 %v1585, %v1590
    %s1594 = sld [smem:[#allocation10 + $0x1e]]
    %v1595 = vstv %s1594
    %v1596 = vadd.f32 %v1591, %v1595
    %v1597 = vadd.f32 %v1592, %v1595
    %v1598 = vadd.f32 %v1593, %v1595
    %v1599 = vtanh.pop %v1596
    %v1600 = vtanh.pop %v1597
    %v1601 = vtanh.pop %v1598
    %s1602 = sld [smem:[#allocation11 + $0x1e]]
    %v1603 = vstv %s1602
    %v1604 = vmul.f32 %v1599, %v1603
    %v1605 = vmul.f32 %v1600, %v1603
    %v1606 = vmul.f32 %v1601, %v1603
    %v1607 = vadd.f32 %v1578, %v1604
    %v1608 = vadd.f32 %v1579, %v1605
    %v1609 = vadd.f32 %v1580, %v1606
    %s1610 = sld [smem:[#allocation7 + $0x1f]]
    %v1611 = vstv %s1610
    %v1612 = vmul.f32 %v193, %v1611
    %v1613 = vmul.f32 %v297, %v1611
    %v1614 = vmul.f32 %v401, %v1611
    %s1615 = sld [smem:[#allocation8 + $0x1f]]
    %v1616 = vstv %s1615
    %v1617 = vmul.f32 %v504, %v1616
    %v1618 = vmul.f32 %v607, %v1616
    %v1619 = vmul.f32 %v710, %v1616
    %v1620 = vadd.f32 %v1612, %v1617
    %v1621 = vadd.f32 %v1613, %v1618
    %v1622 = vadd.f32 %v1614, %v1619
    %s1623 = sld [smem:[#allocation10 + $0x1f]]
    %v1624 = vstv %s1623
    %v1625 = vadd.f32 %v1620, %v1624
    %v1626 = vadd.f32 %v1621, %v1624
    %v1627 = vadd.f32 %v1622, %v1624
    %v1628 = vtanh.pop %v1625
    %v1629 = vtanh.pop %v1626
    %v1630 = vtanh.pop %v1627
    %s1631 = sld [smem:[#allocation11 + $0x1f]]
    %v1632 = vstv %s1631
    %v1633 = vmul.f32 %v1628, %v1632
    %v1634 = vmul.f32 %v1629, %v1632
    %v1635 = vmul.f32 %v1630, %v1632
    %v1636 = vadd.f32 %v1607, %v1633
    %v1637 = vadd.f32 %v1608, %v1634
    %v1638 = vadd.f32 %v1609, %v1635
    %s1639 = sld [smem:[#allocation2]]
    %v1640 = vstv %s1639
    %v1641 = vadd.f32 %v1636, %v1640
    %v1642 = vadd.f32 %v1637, %v1640
    %v1643 = vadd.f32 %v1638, %v1640
    %1644 = vst [vmem:[#allocation13] sm:$0xff] %v1641
    %1645 = vst [vmem:[#allocation13 + $0x8] sm:$0xff] %v1642
    %1646 = vst [vmem:[#allocation13 + $0x10] sm:$0xff] %v1643
    // Predicated region
    $region46: #{tpu_custom_call.1} parent=1 // pred_check
      _
    $region47: #{tpu_custom_call.1} parent=1 // pred_check_branch
      %1648 = sbr.rel (0) target = $region49
    $region48: #{tpu_custom_call.1} parent=1 // pred_region
      %s1650 = ssub.s32 384, 384
      %1651 = vsyncadd [#allocation5], %s1650
      %s1652 = sshll.u32 [#allocation13], 4
      %s1653 = int_to_ptr.vmem [resolvable:$true] %s1652
      %1658 = dma.vmem_to_hbm [thread:$0]  %s1653, 384, %s6, [#allocation5], 128, 128, 8
    $region49: #{tpu_custom_call.1} parent=1 // pred_fallthru
      _
    // Predicated region
    $region50: #{tpu_custom_call.1} parent=1 // pred_check
      _
    $region51: #{tpu_custom_call.1} parent=1 // pred_check_branch
      %1660 = sbr.rel (0) target = $region53
    $region52: #{tpu_custom_call.1} parent=1 // pred_region
      %1661 = dma.done [#allocation5], 384
    $region53: #{tpu_custom_call.1} parent=1 // pred_fallthru
      _
    %1662 = vsyncpa [#allocation4], 1
    %1663 = vsyncpa [#allocation5], 1
    %1664 = vsyncpa [#allocation6], 1
    %1665 = vsyncpa [#allocation9], 1
    %1666 = vsyncpa [#allocation12], 1

</llo_original>
